<compile_context>
chip_gen: v7x
topology: tpu7x:2x2x1
jax: 0.10.0
libtpu: 0.0.40
codegen_flags: <defaults>
</compile_context>

<pallas_src>
import functools
import math

import jax
import jax.numpy as jnp
from jax.experimental import pallas as pl
from jax.experimental.pallas import tpu as pltpu


def _conv_feat_kernel(x_ref, w1_ref, b1_ref, w2_ref, b2_ref, o_ref, *,
                      seq_len, kernel_size):
    # x_ref : (R, Cin)  with R = Bt * seq_len (whole sequences, in order)
    # w1_ref: (K*Cin,  Cout)   b1_ref: (1, Cout)
    # w2_ref: (K*Cout, Cout)   b2_ref: (1, Cout)
    # o_ref : (R, Cout)
    x = x_ref[...]
    rows = x.shape[0]
    pad = kernel_size // 2

    # Position of each row inside its own sequence (block rows are whole
    # sequences, so pos = row % seq_len).  Built once, reused by both convs.
    pos = jax.lax.broadcasted_iota(jnp.int32, (rows, 1), 0) % seq_len

    def conv1d_same(z, w_slab_ref, b_ref):
        # Build the K shifted-tap copies: tap k needs z[t + (k - pad)] with
        # zeros outside the sequence ('same' padding).  The roll is circular
        # over the whole block; the mask zeroes every row whose source would
        # come from a different sequence / the wrapped boundary.
        parts = []
        for k in range(kernel_size):
            d = k - pad                              # source offset
            if d == 0:
                parts.append(z)
                continue
            shifted = pltpu.roll(z, shift=(-d) % rows, axis=0)
            if d < 0:
                shifted = jnp.where(pos < -d, 0.0, shifted)
            else:
                shifted = jnp.where(pos >= seq_len - d, 0.0, shifted)
            parts.append(shifted)
        zcat = jnp.concatenate(parts, axis=-1)       # (R, K*C)
        y = jnp.dot(zcat, w_slab_ref[...],
                    preferred_element_type=jnp.float32,
                    precision=jax.lax.Precision.HIGHEST)
        return y + b_ref[...]

    h = jnp.maximum(conv1d_same(x, w1_ref, b1_ref), 0.0)            # conv1+ReLU
    o_ref[...] = conv1d_same(h, w2_ref, b2_ref).astype(o_ref.dtype)  # conv2


def _pick_batch_block(B, T, Cin, Cout, target_bytes=1 << 20):
    """Pick Bt (sequences per program): divisor of B, tile rows multiple of 8,
    tile ~<= target_bytes, and grid >= 2 whenever B >= 2 (v7x megacore)."""
    per_seq_bytes = T * (Cin + Cout) * 4
    candidates = [bt for bt in range(1, B + 1)
                  if B % bt == 0 and ((bt * T) % 8 == 0 or bt == B)]
    preferred = [bt for bt in candidates if B // bt >= min(2, B)]
    pool = preferred if preferred else candidates
    fitting = [bt for bt in pool if bt * per_seq_bytes <= target_bytes]
    return max(fitting) if fitting else min(pool)


def conv_feature_extractor(x, w1, b1, w2, b2):
    """x: (B, T, Cin); w1: (Cout, Cin, K); b1: (Cout,);
       w2: (Cout, Cout, K); b2: (Cout,).  Returns (B, T, Cout)."""
    B, T, Cin = x.shape
    Cout, _, K = w1.shape
    assert w2.shape == (Cout, Cout, K) and K % 2 == 1  # 'same' padding, stride 1

    # PyTorch Conv1d weights (Cout, Cin, K) -> dense 2-D slab (K*Cin, Cout),
    # tap-major, matching the in-kernel channel concatenation order.
    w1_slab = jnp.transpose(w1, (2, 1, 0)).reshape(K * Cin, Cout)
    w2_slab = jnp.transpose(w2, (2, 1, 0)).reshape(K * Cout, Cout)
    b1_2d = b1.reshape(1, Cout)
    b2_2d = b2.reshape(1, Cout)

    Bt = _pick_batch_block(B, T, Cin, Cout)
    grid = (B // Bt,)
    R = Bt * T                                   # rows per program

    # VMEM budget: double-buffered IO tiles + transient work + resident weights.
    io_bytes = 2 * R * (Cin + Cout) * 4
    work_bytes = R * (K * Cin + K * Cout + 2 * Cout) * 4
    w_bytes = (K * Cin + K * Cout + 2) * Cout * 4
    vmem_limit = int(min(max(2 * (io_bytes + work_bytes + w_bytes), 8 << 20),
                         32 << 20))

    x2d = x.reshape(B * T, Cin)                  # free, contiguous

    out2d = pl.pallas_call(
        functools.partial(_conv_feat_kernel, seq_len=T, kernel_size=K),
        out_shape=jax.ShapeDtypeStruct((B * T, Cout), x.dtype),
        grid_spec=pltpu.PrefetchScalarGridSpec(
            num_scalar_prefetch=0,
            grid=grid,
            in_specs=[
                pl.BlockSpec((R, Cin), lambda i: (i, 0)),           # x tile
                pl.BlockSpec((K * Cin, Cout), lambda i: (0, 0)),    # w1 slab (resident)
                pl.BlockSpec((1, Cout), lambda i: (0, 0)),          # b1 (resident)
                pl.BlockSpec((K * Cout, Cout), lambda i: (0, 0)),   # w2 slab (resident)
                pl.BlockSpec((1, Cout), lambda i: (0, 0)),          # b2 (resident)
            ],
            out_specs=pl.BlockSpec((R, Cout), lambda i: (i, 0)),
        ),
        compiler_params=pltpu.CompilerParams(
            dimension_semantics=("parallel",),
            vmem_limit_bytes=vmem_limit),
    )(x2d, w1_slab, b1_2d, w2_slab, b2_2d)

    return out2d.reshape(B, T, Cout)


def _reference(x, w1, b1, w2, b2):
    """Pure-JAX reference mirroring the PyTorch forward (channels-last)."""
    def conv1d_same(z, w, b):
        Cout, Cin, K = w.shape
        pad = K // 2
        T = z.shape[1]
        zp = jnp.pad(z, ((0, 0), (pad, pad), (0, 0)))
        out = jnp.zeros(z.shape[:2] + (Cout,), jnp.float32)
        for k in range(K):
            out = out + jnp.einsum('btc,oc->bto', zp[:, k:k + T, :], w[:, :, k],
                                   precision=jax.lax.Precision.HIGHEST)
        return out + b

    h = jnp.maximum(conv1d_same(x, w1, b1), 0.0)
    return conv1d_same(h, w2, b2)


if __name__ == "__main__":
    # Small shapes consistent with the module: (batch, seq, input_dim)
    B, T = 2, 16
    input_dim, output_dim, kernel_size = 8, 32, 3

    key = jax.random.PRNGKey(0)
    kx, kw1, kb1, kw2, kb2 = jax.random.split(key, 5)

    x = jax.random.normal(kx, (B, T, input_dim), dtype=jnp.float32)

    # nn.Conv1d init scale ~ 1/sqrt(fan_in) with fan_in = Cin * K
    s1 = 1.0 / math.sqrt(input_dim * kernel_size)
    w1 = jax.random.uniform(kw1, (output_dim, input_dim, kernel_size),
                            minval=-s1, maxval=s1, dtype=jnp.float32)
    b1 = jax.random.uniform(kb1, (output_dim,),
                            minval=-s1, maxval=s1, dtype=jnp.float32)
    s2 = 1.0 / math.sqrt(output_dim * kernel_size)
    w2 = jax.random.uniform(kw2, (output_dim, output_dim, kernel_size),
                            minval=-s2, maxval=s2, dtype=jnp.float32)
    b2 = jax.random.uniform(kb2, (output_dim,),
                            minval=-s2, maxval=s2, dtype=jnp.float32)

    out = conv_feature_extractor(x, w1, b1, w2, b2)
    out = jax.block_until_ready(out)

    ref = _reference(x, w1, b1, w2, b2)
    assert out.shape == (B, T, output_dim)
    assert jnp.allclose(out, ref, atol=1e-5, rtol=1e-5), "mismatch vs reference"

    print("KERNEL_OK")
</pallas_src>

<mosaic_0001>
module attributes {stable_mosaic.version = 11 : i64} {
  func.func @_conv_feat_kernel(%arg0: i32, %arg1: memref<16x8xf32, #tpu.memory_space<vmem>>, %arg2: memref<24x32xf32, #tpu.memory_space<vmem>>, %arg3: memref<1x32xf32, #tpu.memory_space<vmem>>, %arg4: memref<96x32xf32, #tpu.memory_space<vmem>>, %arg5: memref<1x32xf32, #tpu.memory_space<vmem>>, %arg6: memref<16x32xf32, #tpu.memory_space<vmem>>) attributes {dimension_semantics = [#tpu.dimension_semantics<parallel>], iteration_bounds = array<i64: 2>, scalar_prefetch = 0 : i64, scratch_operands = 0 : i64, tpu.core_type = #tpu.core_type<tc>, window_params = [{transform_indices = @transform_0, window_bounds = array<i64: 16, 8>}, {pipeline_mode = #tpu.pipeline_mode<synchronous>, transform_indices = @transform_1, window_bounds = array<i64: 24, 32>}, {pipeline_mode = #tpu.pipeline_mode<synchronous>, transform_indices = @transform_2, window_bounds = array<i64: 1, 32>}, {pipeline_mode = #tpu.pipeline_mode<synchronous>, transform_indices = @transform_3, window_bounds = array<i64: 96, 32>}, {pipeline_mode = #tpu.pipeline_mode<synchronous>, transform_indices = @transform_4, window_bounds = array<i64: 1, 32>}, {transform_indices = @transform_5, window_bounds = array<i64: 16, 32>}]} {
    %c0 = arith.constant 0 : index
    %c0_0 = arith.constant 0 : index
    %0 = vector.load %arg1[%c0, %c0_0] : memref<16x8xf32, #tpu.memory_space<vmem>>, vector<16x8xf32>
    %1 = tpu.iota {dimensions = array<i32: 0>} : vector<16x1xi32>
    %c16_i32 = arith.constant 16 : i32
    %c0_i32 = arith.constant 0 : i32
    %2 = arith.cmpi eq, %c16_i32, %c0_i32 : i32
    %c1_i32 = arith.constant 1 : i32
    %3 = arith.select %2, %c1_i32, %c16_i32 : i32
    %4 = vector.broadcast %3 : i32 to vector<16x1xi32>
    %5 = arith.remsi %1, %4 : vector<16x1xi32>
    %c0_i32_1 = arith.constant 0 : i32
    %6 = vector.broadcast %c0_i32_1 : i32 to vector<16x1xi32>
    %7 = arith.cmpi ne, %5, %6 : vector<16x1xi32>
    %c0_i32_2 = arith.constant 0 : i32
    %8 = vector.broadcast %c0_i32_2 : i32 to vector<16x1xi32>
    %9 = arith.cmpi slt, %5, %8 : vector<16x1xi32>
    %c0_i32_3 = arith.constant 0 : i32
    %10 = arith.cmpi slt, %3, %c0_i32_3 : i32
    %11 = vector.broadcast %10 : i1 to vector<16x1xi1>
    %12 = vector.broadcast %11 : vector<16x1xi1> to vector<16x1xi1>
    %13 = arith.xori %9, %12 : vector<16x1xi1>
    %14 = arith.andi %13, %7 : vector<16x1xi1>
    %15 = vector.broadcast %3 : i32 to vector<16x1xi32>
    %16 = arith.addi %5, %15 : vector<16x1xi32>
    %17 = arith.select %14, %16, %5 : vector<16x1xi1>, vector<16x1xi32>
    %c1_i32_4 = arith.constant 1 : i32
    %18 = tpu.dynamic_rotate %0 by %c1_i32_4 dim 0 : vector<16x8xf32>, i32 -> vector<16x8xf32>
    %c1_i32_5 = arith.constant 1 : i32
    %19 = vector.broadcast %c1_i32_5 : i32 to vector<16x1xi32>
    %20 = arith.cmpi slt, %17, %19 : vector<16x1xi32>
    %cst = arith.constant 0.000000e+00 : f32
    %21 = vector.shape_cast %20 : vector<16x1xi1> to vector<16x1xi1>
    %22 = vector.broadcast %21 : vector<16x1xi1> to vector<16x8xi1>
    %23 = vector.broadcast %cst : f32 to vector<16x8xf32>
    %24 = arith.select %22, %23, %18 : vector<16x8xi1>, vector<16x8xf32>
    %c15_i32 = arith.constant 15 : i32
    %25 = tpu.dynamic_rotate %0 by %c15_i32 dim 0 : vector<16x8xf32>, i32 -> vector<16x8xf32>
    %c15_i32_6 = arith.constant 15 : i32
    %26 = vector.broadcast %c15_i32_6 : i32 to vector<16x1xi32>
    %27 = arith.cmpi sge, %17, %26 : vector<16x1xi32>
    %cst_7 = arith.constant 0.000000e+00 : f32
    %28 = vector.shape_cast %27 : vector<16x1xi1> to vector<16x1xi1>
    %29 = vector.broadcast %28 : vector<16x1xi1> to vector<16x8xi1>
    %30 = vector.broadcast %cst_7 : f32 to vector<16x8xf32>
    %31 = arith.select %29, %30, %25 : vector<16x8xi1>, vector<16x8xf32>
    %32 = tpu.concatenate %24, %0, %31 in 1 : vector<16x8xf32>, vector<16x8xf32>, vector<16x8xf32> -> vector<16x24xf32>
    %c0_8 = arith.constant 0 : index
    %c0_9 = arith.constant 0 : index
    %33 = vector.load %arg2[%c0_8, %c0_9] : memref<24x32xf32, #tpu.memory_space<vmem>>, vector<24x32xf32>
    %cst_10 = arith.constant dense<0.000000e+00> : vector<16x32xf32>
    %34 = tpu.matmul %32, %33, %cst_10 {dimension_numbers = #tpu.dot_dimension_numbers<[1], [0], [0], [1], [0, 0, 1, 1], [], []>, precision = #tpu.contract_precision<fp32>} : vector<16x24xf32>, vector<24x32xf32>, vector<16x32xf32> -> vector<16x32xf32>
    %c0_11 = arith.constant 0 : index
    %c0_12 = arith.constant 0 : index
    %35 = vector.load %arg3[%c0_11, %c0_12] : memref<1x32xf32, #tpu.memory_space<vmem>>, vector<1x32xf32>
    %36 = vector.broadcast %35 : vector<1x32xf32> to vector<16x32xf32>
    %37 = arith.addf %34, %36 : vector<16x32xf32>
    %cst_13 = arith.constant 0.000000e+00 : f32
    %38 = vector.broadcast %cst_13 : f32 to vector<16x32xf32>
    %39 = arith.maximumf %37, %38 : vector<16x32xf32>
    %c1_i32_14 = arith.constant 1 : i32
    %40 = tpu.dynamic_rotate %39 by %c1_i32_14 dim 0 : vector<16x32xf32>, i32 -> vector<16x32xf32>
    %c1_i32_15 = arith.constant 1 : i32
    %41 = vector.broadcast %c1_i32_15 : i32 to vector<16x1xi32>
    %42 = arith.cmpi slt, %17, %41 : vector<16x1xi32>
    %cst_16 = arith.constant 0.000000e+00 : f32
    %43 = vector.shape_cast %42 : vector<16x1xi1> to vector<16x1xi1>
    %44 = vector.broadcast %43 : vector<16x1xi1> to vector<16x32xi1>
    %45 = vector.broadcast %cst_16 : f32 to vector<16x32xf32>
    %46 = arith.select %44, %45, %40 : vector<16x32xi1>, vector<16x32xf32>
    %c15_i32_17 = arith.constant 15 : i32
    %47 = tpu.dynamic_rotate %39 by %c15_i32_17 dim 0 : vector<16x32xf32>, i32 -> vector<16x32xf32>
    %c15_i32_18 = arith.constant 15 : i32
    %48 = vector.broadcast %c15_i32_18 : i32 to vector<16x1xi32>
    %49 = arith.cmpi sge, %17, %48 : vector<16x1xi32>
    %cst_19 = arith.constant 0.000000e+00 : f32
    %50 = vector.shape_cast %49 : vector<16x1xi1> to vector<16x1xi1>
    %51 = vector.broadcast %50 : vector<16x1xi1> to vector<16x32xi1>
    %52 = vector.broadcast %cst_19 : f32 to vector<16x32xf32>
    %53 = arith.select %51, %52, %47 : vector<16x32xi1>, vector<16x32xf32>
    %54 = tpu.concatenate %46, %39, %53 in 1 : vector<16x32xf32>, vector<16x32xf32>, vector<16x32xf32> -> vector<16x96xf32>
    %c0_20 = arith.constant 0 : index
    %c0_21 = arith.constant 0 : index
    %55 = vector.load %arg4[%c0_20, %c0_21] : memref<96x32xf32, #tpu.memory_space<vmem>>, vector<96x32xf32>
    %cst_22 = arith.constant dense<0.000000e+00> : vector<16x32xf32>
    %56 = tpu.matmul %54, %55, %cst_22 {dimension_numbers = #tpu.dot_dimension_numbers<[1], [0], [0], [1], [0, 0, 1, 1], [], []>, precision = #tpu.contract_precision<fp32>} : vector<16x96xf32>, vector<96x32xf32>, vector<16x32xf32> -> vector<16x32xf32>
    %c0_23 = arith.constant 0 : index
    %c0_24 = arith.constant 0 : index
    %57 = vector.load %arg5[%c0_23, %c0_24] : memref<1x32xf32, #tpu.memory_space<vmem>>, vector<1x32xf32>
    %58 = vector.broadcast %57 : vector<1x32xf32> to vector<16x32xf32>
    %59 = arith.addf %56, %58 : vector<16x32xf32>
    %c0_25 = arith.constant 0 : index
    %c0_26 = arith.constant 0 : index
    %60 = vector.load %arg6[%c0_25, %c0_26] : memref<16x32xf32, #tpu.memory_space<vmem>>, vector<16x32xf32>
    tpu.vector_store %arg6[%c0_25, %c0_26], %59 {strides = array<i32>} : memref<16x32xf32, #tpu.memory_space<vmem>>, vector<16x32xf32>,
    return
  }
  func.func @transform_0(%arg0: i32) -> (i32, i32) {
    %c0_i32 = arith.constant 0 : i32
    %c0_i32_0 = arith.constant 0 : i32
    return %arg0, %c0_i32 : i32, i32
  }
  func.func @transform_1(%arg0: i32) -> (i32, i32) {
    %c0_i32 = arith.constant 0 : i32
    %c0_i32_0 = arith.constant 0 : i32
    %c0_i32_1 = arith.constant 0 : i32
    return %c0_i32, %c0_i32_0 : i32, i32
  }
  func.func @transform_2(%arg0: i32) -> (i32, i32) {
    %c0_i32 = arith.constant 0 : i32
    %c0_i32_0 = arith.constant 0 : i32
    %c0_i32_1 = arith.constant 0 : i32
    return %c0_i32, %c0_i32_0 : i32, i32
  }
  func.func @transform_3(%arg0: i32) -> (i32, i32) {
    %c0_i32 = arith.constant 0 : i32
    %c0_i32_0 = arith.constant 0 : i32
    %c0_i32_1 = arith.constant 0 : i32
    return %c0_i32, %c0_i32_0 : i32, i32
  }
  func.func @transform_4(%arg0: i32) -> (i32, i32) {
    %c0_i32 = arith.constant 0 : i32
    %c0_i32_0 = arith.constant 0 : i32
    %c0_i32_1 = arith.constant 0 : i32
    return %c0_i32, %c0_i32_0 : i32, i32
  }
  func.func @transform_5(%arg0: i32) -> (i32, i32) {
    %c0_i32 = arith.constant 0 : i32
    %c0_i32_0 = arith.constant 0 : i32
    return %arg0, %c0_i32 : i32, i32
  }
}

</mosaic_0001>

<llo_original>
// kernel: tpu_custom_call.1
$region0: #{tpu_custom_call.1}
  #allocation0 [shape = 'u32[]', space=smem, size = 0x4, offset = 0x4, fixed_abs, tag = 'smem constant byte address 0x4 - core index']
  #allocation1 [shape = 'u32[144,128]{1,0:T(1,128)}', space=vmem, size = 0x12000, scoped, tag = 'internal scratch']
  %s0 = inlined_call_operand.vmem [shape: f32[32,8], index: 0, kind: input, shape index: {}]
  %s1 = inlined_call_operand.vmem [shape: f32[24,32], index: 1, kind: input, shape index: {}]
  %s2 = inlined_call_operand.vmem [shape: f32[1,32], index: 2, kind: input, shape index: {}]
  %s3 = inlined_call_operand.vmem [shape: f32[96,32], index: 3, kind: input, shape index: {}]
  %s4 = inlined_call_operand.vmem [shape: f32[1,32], index: 4, kind: input, shape index: {}]
  %s5 = inlined_call_operand.hbm [shape: f32[32,32], index: 5, kind: output, shape index: {}]
  %s6 = sld [smem:[#allocation0]]
  $region53: #{tpu_custom_call.1} parent=0
    _
  %s8 = ssub.s32 1, %s6
  %s9 = scalar_select 0, %s8, %s6
  $region1: #{tpu_custom_call.1} parent=0
    #allocation2 [shape = 'u8[16384]{0}', space=vmem, size = 0x4000, scoped, tag = 'output window, operand 0']
    #allocation3 [shape = 's32[2]{0}', space=sflag, size = 0x8, scoped, tag = 'scoped memory for tpu_custom_call.1']
    %10 = vsyncpa [#allocation3], 0
    %s11 = scalar_lea.sflag [#allocation3], 1
    %12 = vsyncpa %s11, 0
    loop: start=0, step=1, limit=4
    $region2: #{tpu_custom_call.1} parent=1 // loop_pre_header
      _
    $region3: #{tpu_custom_call.1} parent=1 // loop_header
      %s14 = sphi 0, %s18
      %p15 = scmp.ge.s32.totalorder %s14, 4
      %s24 = sphi 0, %s26
      %s27 = sphi 0, %s24
      %s28 = sphi 0, %s27
      %s44 = sphi 0, %s28
      %s48 = sphi 0, %s48
      %s50 = sphi 0, %s48
      %s51 = sphi 0, %s50
      %s65 = sphi 0, %s51
      %s69 = sphi 0, %s69
      %s71 = sphi 0, %s69
      %s72 = sphi 0, %s71
      %s86 = sphi 0, %s72
      %s90 = sphi 0, %s90
      %s92 = sphi 0, %s90
      %s93 = sphi 0, %s92
      %s107 = sphi 0, %s93
      %s111 = sphi 0, %s111
      %s113 = sphi 0, %s111
      %s114 = sphi 0, %s113
      %s128 = sphi 0, %s114
      %s134 = sphi 0, %s136
      %s137 = sphi 0, %s134
      %s138 = sphi 0, %s137
      %s154 = sphi 0, %s138
    $region4: #{tpu_custom_call.1} parent=1 // loop_header_branch
      %17 = sbr.rel (%p15) target = $region8
    $region5: #{tpu_custom_call.1} parent=1 // loop_body
      %s19 = ssub.s32 %s14, 1
      %s20 = ssub.s32 %s14, 2
      %s21 = sadd.s32 %s14, 1
      %s22 = ssub.s32 %s14, %s21
      %p23 = scmp.eq.s32.totalorder %s22, 0
      %s25 = sadd.s32 %s24, 1
      %s26 = scalar_select %p23, %s24, %s25
      %p29 = pneg %p23
      %p30 = scmp.eq.s32.totalorder %s14, 1
      %p31 = por %p29, %p30
      %p32 = scmp.ne.s32.totalorder %s24, %s27
      %p33 = scmp.eq.s32.totalorder %s14, 0
      %p34 = por %p32, %p33
      %p35 = scmp.ne.s32.totalorder %s24, %s27
      %p36 = scmp.eq.s32.totalorder %s19, 1
      %p37 = por %p35, %p36
      %p38 = scmp.ne.s32.totalorder %s27, %s28
      %p39 = scmp.eq.s32.totalorder %s19, 0
      %p40 = por %p38, %p39
      %p41 = scmp.ne.s32.totalorder %s27, %s28
      %p42 = scmp.eq.s32.totalorder %s20, 1
      %p43 = por %p41, %p42
      %p45 = scmp.ne.s32.totalorder %s28, %s44
      %p46 = scmp.eq.s32.totalorder %s20, 0
      %p47 = por %p45, %p46
      %s49 = sadd.s32 %s48, 1
      %p52 = scmp.eq.s32.totalorder %s14, 1
      %p53 = scmp.ne.s32.totalorder %s48, %s50
      %p54 = scmp.eq.s32.totalorder %s14, 0
      %p55 = por %p53, %p54
      %p56 = scmp.ne.s32.totalorder %s48, %s50
      %p57 = scmp.eq.s32.totalorder %s19, 1
      %p58 = por %p56, %p57
      %p59 = scmp.ne.s32.totalorder %s50, %s51
      %p60 = scmp.eq.s32.totalorder %s19, 0
      %p61 = por %p59, %p60
      %p62 = scmp.ne.s32.totalorder %s50, %s51
      %p63 = scmp.eq.s32.totalorder %s20, 1
      %p64 = por %p62, %p63
      %p66 = scmp.ne.s32.totalorder %s51, %s65
      %p67 = scmp.eq.s32.totalorder %s20, 0
      %p68 = por %p66, %p67
      %s70 = sadd.s32 %s69, 1
      %p73 = scmp.eq.s32.totalorder %s14, 1
      %p74 = scmp.ne.s32.totalorder %s69, %s71
      %p75 = scmp.eq.s32.totalorder %s14, 0
      %p76 = por %p74, %p75
      %p77 = scmp.ne.s32.totalorder %s69, %s71
      %p78 = scmp.eq.s32.totalorder %s19, 1
      %p79 = por %p77, %p78
      %p80 = scmp.ne.s32.totalorder %s71, %s72
      %p81 = scmp.eq.s32.totalorder %s19, 0
      %p82 = por %p80, %p81
      %p83 = scmp.ne.s32.totalorder %s71, %s72
      %p84 = scmp.eq.s32.totalorder %s20, 1
      %p85 = por %p83, %p84
      %p87 = scmp.ne.s32.totalorder %s72, %s86
      %p88 = scmp.eq.s32.totalorder %s20, 0
      %p89 = por %p87, %p88
      %s91 = sadd.s32 %s90, 1
      %p94 = scmp.eq.s32.totalorder %s14, 1
      %p95 = scmp.ne.s32.totalorder %s90, %s92
      %p96 = scmp.eq.s32.totalorder %s14, 0
      %p97 = por %p95, %p96
      %p98 = scmp.ne.s32.totalorder %s90, %s92
      %p99 = scmp.eq.s32.totalorder %s19, 1
      %p100 = por %p98, %p99
      %p101 = scmp.ne.s32.totalorder %s92, %s93
      %p102 = scmp.eq.s32.totalorder %s19, 0
      %p103 = por %p101, %p102
      %p104 = scmp.ne.s32.totalorder %s92, %s93
      %p105 = scmp.eq.s32.totalorder %s20, 1
      %p106 = por %p104, %p105
      %p108 = scmp.ne.s32.totalorder %s93, %s107
      %p109 = scmp.eq.s32.totalorder %s20, 0
      %p110 = por %p108, %p109
      %s112 = sadd.s32 %s111, 1
      %p115 = scmp.eq.s32.totalorder %s14, 1
      %p116 = scmp.ne.s32.totalorder %s111, %s113
      %p117 = scmp.eq.s32.totalorder %s14, 0
      %p118 = por %p116, %p117
      %p119 = scmp.ne.s32.totalorder %s111, %s113
      %p120 = scmp.eq.s32.totalorder %s19, 1
      %p121 = por %p119, %p120
      %p122 = scmp.ne.s32.totalorder %s113, %s114
      %p123 = scmp.eq.s32.totalorder %s19, 0
      %p124 = por %p122, %p123
      %p125 = scmp.ne.s32.totalorder %s113, %s114
      %p126 = scmp.eq.s32.totalorder %s20, 1
      %p127 = por %p125, %p126
      %p129 = scmp.ne.s32.totalorder %s114, %s128
      %p130 = scmp.eq.s32.totalorder %s20, 0
      %p131 = por %p129, %p130
      %s132 = ssub.s32 %s14, %s21
      %p133 = scmp.eq.s32.totalorder %s132, 0
      %s135 = sadd.s32 %s134, 1
      %s136 = scalar_select %p133, %s134, %s135
      %p139 = pneg %p133
      %p140 = scmp.eq.s32.totalorder %s14, 1
      %p141 = por %p139, %p140
      %p142 = scmp.ne.s32.totalorder %s134, %s137
      %p143 = scmp.eq.s32.totalorder %s14, 0
      %p144 = por %p142, %p143
      %p145 = scmp.ne.s32.totalorder %s134, %s137
      %p146 = scmp.eq.s32.totalorder %s19, 1
      %p147 = por %p145, %p146
      %p148 = scmp.ne.s32.totalorder %s137, %s138
      %p149 = scmp.eq.s32.totalorder %s19, 0
      %p150 = por %p148, %p149
      %p151 = scmp.ne.s32.totalorder %s137, %s138
      %p152 = scmp.eq.s32.totalorder %s20, 1
      %p153 = por %p151, %p152
      %p155 = scmp.ne.s32.totalorder %s138, %s154
      %p156 = scmp.eq.s32.totalorder %s20, 0
      %p157 = por %p155, %p156
      %p158 = scmp.le.s32.totalorder 1, %s14
      %p159 = scmp.lt.s32.totalorder %s14, 3
      %p160 = pnand %p158, %p159
      %p161 = pneg %p160
      // Predicated region
      $region9: #{tpu_custom_call.1} parent=5 // pred_check
        _
      $region10: #{tpu_custom_call.1} parent=5 // pred_check_branch
        %163 = sbr.rel (%p160) target = $region12
      $region11: #{tpu_custom_call.1} parent=5 // pred_region
        %s164 = ssub.s32 %s14, 1
        // Predicated region
        $region13: #{tpu_custom_call.1} parent=11 // pred_check
          %p165 = pneg %p61
        $region14: #{tpu_custom_call.1} parent=11 // pred_check_branch
          %167 = sbr.rel (%p165) target = $region16
        $region15: #{tpu_custom_call.1} parent=11 // pred_region
          _
        $region16: #{tpu_custom_call.1} parent=11 // pred_fallthru
          _
        // Predicated region
        $region17: #{tpu_custom_call.1} parent=11 // pred_check
          %p168 = pneg %p82
        $region18: #{tpu_custom_call.1} parent=11 // pred_check_branch
          %170 = sbr.rel (%p168) target = $region20
        $region19: #{tpu_custom_call.1} parent=11 // pred_region
          _
        $region20: #{tpu_custom_call.1} parent=11 // pred_fallthru
          _
        // Predicated region
        $region21: #{tpu_custom_call.1} parent=11 // pred_check
          %p171 = pneg %p103
        $region22: #{tpu_custom_call.1} parent=11 // pred_check_branch
          %173 = sbr.rel (%p171) target = $region24
        $region23: #{tpu_custom_call.1} parent=11 // pred_region
          _
        $region24: #{tpu_custom_call.1} parent=11 // pred_fallthru
          _
        // Predicated region
        $region25: #{tpu_custom_call.1} parent=11 // pred_check
          %p174 = pneg %p124
        $region26: #{tpu_custom_call.1} parent=11 // pred_check_branch
          %176 = sbr.rel (%p174) target = $region28
        $region27: #{tpu_custom_call.1} parent=11 // pred_region
          _
        $region28: #{tpu_custom_call.1} parent=11 // pred_fallthru
          _
      $region12: #{tpu_custom_call.1} parent=5 // pred_fallthru
        _
      %p177 = scmp.lt.s32.totalorder %s14, 2
      // Predicated region
      $region29: #{tpu_custom_call.1} parent=5 // pred_check
        %p178 = pneg %p177
      $region30: #{tpu_custom_call.1} parent=5 // pred_check_branch
        %180 = sbr.rel (%p178) target = $region32
      $region31: #{tpu_custom_call.1} parent=5 // pred_region
        // Predicated region
        $region33: #{tpu_custom_call.1} parent=31 // pred_check
          %p181 = pneg %p34
        $region34: #{tpu_custom_call.1} parent=31 // pred_check_branch
          %183 = sbr.rel (%p181) target = $region36
        $region35: #{tpu_custom_call.1} parent=31 // pred_region
          %s184 = smul.u32 2, %s14
          %p185 = scmp.lt.s32.totalorder %s184, 3
          %s186 = scalar_select %p185, %s184, 3
          %s187 = smul.addr %s186, 8
          %s188 = scalar_lea.vmem %s0, %s187
          %s189 = smul.u32 2, %s14
        $region36: #{tpu_custom_call.1} parent=31 // pred_fallthru
          _
      $region32: #{tpu_custom_call.1} parent=5 // pred_fallthru
        _
      %p190 = scmp.le.s32.totalorder 1, %s14
      %p191 = scmp.lt.s32.totalorder %s14, 3
      %p192 = pnand %p190, %p191
      %p193 = pneg %p192
      // Predicated region
      $region37: #{tpu_custom_call.1} parent=5 // pred_check
        _
      $region38: #{tpu_custom_call.1} parent=5 // pred_check_branch
        %195 = sbr.rel (%p192) target = $region40
      $region39: #{tpu_custom_call.1} parent=5 // pred_region
        %s196 = ssub.s32 %s14, 1
        %s197 = smul.u32 2, %s19
        %p198 = scmp.lt.s32.totalorder %s197, 3
        %s199 = scalar_select %p198, %s197, 3
        %s200 = smul.addr %s199, 8
        %s201 = scalar_lea.vmem %s0, %s200
        %p202 = pneg %p40
        %p203 = pneg %p37
        %p204 = pneg %p61
        %p205 = pneg %p58
        %p206 = pneg %p82
        %p207 = pneg %p79
        %p208 = pneg %p103
        %p209 = pneg %p100
        %p210 = pneg %p124
        %p211 = pneg %p121
        %p212 = pneg %p150
        %p213 = pneg %p147
        %s214 = sand.u32 %s137, 1
        %s215 = scalar_lea.sflag [#allocation3], %s214
        %s216 = sand.u32 %s137, 1
        %s217 = smul.addr %s216, 16
        %s218 = scalar_lea.vmem [#allocation2], %s217
        %s219 = smul.u32 2, %s19
        %p220 = scmp.lt.s32.totalorder %s219, 3
        %s221 = scalar_select %p220, %s219, 3
        %s222 = smul.addr %s221, 8
        %s223 = scalar_lea.vmem %s0, %s222
        %s224 = smul.u32 2, %s19
        %s225 = smul.u32 2, %s19
        %v226 = vld [vmem:[%s223] sm:$0xff]
        %v227 = vld [vmem:[%s223 + $0x8] sm:$0xff]
        %v228 = vlaneseq
        %v229 = vshrl.u32 %v228, 7
        %v230 = vadd.s32 %v229, 8
        %vm231 = vcmp.lt.s32.totalorder %v229, 0
        %v232 = vsub.s32 0, %v229
        %v233 = vsel %vm231, %v232, %v229
        %v234 = vshrl.u32 %v233, 4
        %v235 = vand.u32 %v233, 15
        %v236 = vsub.s32 0, %v235
        %v237 = vsel %vm231, %v236, %v235
        %vm238 = vcmp.lt.s32.totalorder %v230, 0
        %v239 = vsub.s32 0, %v230
        %v240 = vsel %vm238, %v239, %v230
        %v241 = vshrl.u32 %v240, 4
        %v242 = vand.u32 %v240, 15
        %v243 = vsub.s32 0, %v242
        %v244 = vsel %vm238, %v243, %v242
        %vm245 = vcmp.ne.s32.totalorder %v237, 0
        %vm246 = vcmp.ne.s32.totalorder %v244, 0
        %vm247 = vcmp.lt.s32.totalorder %v237, 0
        %vm248 = vcmp.lt.s32.totalorder %v244, 0
        %vm249 = vmand %vm247, %vm245
        %vm250 = vmand %vm248, %vm246
        %v251 = vadd.s32 %v237, 16
        %v252 = vadd.s32 %v244, 16
        %v253 = vsel %vm249, %v251, %v237
        %v254 = vsel %vm250, %v252, %v244
        %v255 = vrot.slane %v226, 7
        %v256 = vrot.slane %v227, 7
        %vm257 = vcmp.lt.s32.totalorder %v229, 1
        %v258 = vsel %vm257, %v255, %v256
        %v259 = vsel %vm257, %v256, %v255
        %vm260 = vcmp.lt.s32.totalorder %v253, 1
        %vm261 = vcmp.lt.s32.totalorder %v254, 1
        %v262 = vsel %vm260, 1, 0
        %v263 = vsel %vm261, 1, 0
        %vm264 = vcmp.eq.s32.totalorder %v262, 1
        %vm265 = vcmp.eq.s32.totalorder %v263, 1
        %v266 = vsel %vm264, 0.0, %v259
        %v267 = vsel %vm265, 0.0, %v258
        %v268 = vrot.slane %v226, 1
        %v269 = vrot.slane %v227, 1
        %vm270 = vcmp.lt.s32.totalorder %v229, 7
        %v271 = vsel %vm270, %v268, %v269
        %v272 = vsel %vm270, %v269, %v268
        %vm273 = vcmp.ge.s32.totalorder %v253, 15
        %vm274 = vcmp.ge.s32.totalorder %v254, 15
        %v275 = vsel %vm273, 1, 0
        %v276 = vsel %vm274, 1, 0
        %vm277 = vcmp.eq.s32.totalorder %v275, 1
        %vm278 = vcmp.eq.s32.totalorder %v276, 1
        %v279 = vsel %vm277, 0.0, %v271
        %v280 = vsel %vm278, 0.0, %v272
        %283 = vrot.lane.b32.xlu0 %v226, 8
        %v284 = vpop.permute.xlu0 %283
        %285 = vrot.lane.b32.xlu0 %v227, 8
        %v286 = vpop.permute.xlu0 %285
        %291 = vrot.lane.b32.xlu0 %v279, 16
        %v292 = vpop.permute.xlu0 %291
        %293 = vrot.lane.b32.xlu0 %v280, 16
        %v294 = vpop.permute.xlu0 %293
        %vm297 = vcmask 64512
        %v298 = vsel %vm297, %v266, %v284
        %v299 = vsel %vm297, %v267, %v286
        %vm300 = vcmask 130048
        %v301 = vsel %vm300, %v298, %v292
        %v302 = vsel %vm300, %v299, %v294
        %v303 = vld [vmem:[%s1] sm:$0xff]
        %v304 = vld [vmem:[%s1 + $0x8] sm:$0xff]
        %v305 = vld [vmem:[%s1 + $0x10] sm:$0xff]
        %v306 = vld [vmem:[%s2] sm:$0x1]
        %v308 = vlaneseq
        %v309 = vshrl.u32 %v308, 7
        %v310 = vsub.s32 0, %v309
        %v311 = vrot.slane %v306, %v310
        %vm313 = vcmask 195584
        %v315 = vsel %vm313, %v301, 0
        %v318 = vsel %vm313, %v302, 0
        %320 = vmatprep.subr.mxu0 0.0
        %v321 = vand.u32 %v303, 4294901760
        %322 = vmatpush1.msra.mxu0 %v321
        %323 = vmatprep.subr.mxu0 0.0
        %v324 = vand.u32 %v304, 4294901760
        %325 = vmatpush1.msra.mxu0 %v324
        %326 = vmatprep.subr.mxu0 0.0
        %v327 = vand.u32 %v305, 4294901760
        %328 = vmatpush1.msra.mxu0 %v327
        %329 = vmatprep.subr.mxu0 0.0
        %330 = vmatpush1.msra.mxu0 0.0
        %331 = vmatprep.subr.mxu0 0.0
        %332 = vmatpush1.msra.mxu0 0.0
        %333 = vmatprep.subr.mxu0 0.0
        %334 = vmatpush1.msra.mxu0 0.0
        %335 = vmatprep.subr.mxu0 0.0
        %336 = vmatpush1.msra.mxu0 0.0
        %337 = vmatprep.subr.mxu0 0.0
        %338 = vmatpush1.msra.mxu0 0.0
        %339 = vmatprep.subr.mxu0 0.0
        %340 = vmatpush1.msra.mxu0 0.0
        %341 = vmatprep.subr.mxu0 0.0
        %342 = vmatpush1.msra.mxu0 0.0
        %343 = vmatprep.subr.mxu0 0.0
        %344 = vmatpush1.msra.mxu0 0.0
        %345 = vmatprep.subr.mxu0 0.0
        %346 = vmatpush1.msra.mxu0 0.0
        %347 = vmatprep.subr.mxu0 0.0
        %348 = vmatpush1.msra.mxu0 0.0
        %349 = vmatprep.subr.mxu0 0.0
        %350 = vmatpush1.msra.mxu0 0.0
        %351 = vmatprep.subr.mxu0 0.0
        %352 = vmatpush1.msra.mxu0 0.0
        %353 = vmatprep.subr.mxu0 0.0
        %354 = vmatpush1.msra.mxu0 0.0
        %355 = vmatprep.subr.mxu0 0.0
        %356 = vmatpush1.msra.mxu0 0.0
        %357 = vmatprep.subr.mxu0 0.0
        %358 = vmatpush1.msra.mxu0 0.0
        %359 = vmatprep.subr.mxu0 0.0
        %360 = vmatpush1.msra.mxu0 0.0
        %361 = vmatprep.subr.mxu0 0.0
        %362 = vmatpush1.msra.mxu0 0.0
        %363 = vmatprep.subr.mxu0 0.0
        %364 = vmatpush1.msra.mxu0 0.0
        %365 = vmatprep.subr.mxu0 0.0
        %366 = vmatpush1.msra.mxu0 0.0
        %367 = vmatprep.subr.mxu0 0.0
        %368 = vmatpush1.msra.mxu0 0.0
        %369 = vmatprep.subr.mxu0 0.0
        %370 = vmatpush1.msra.mxu0 0.0
        %371 = vmatprep.subr.mxu0 0.0
        %372 = vmatpush1.msra.mxu0 0.0
        %373 = vmatprep.subr.mxu0 0.0
        %374 = vmatpush1.msra.mxu0 0.0
        %375 = vmatprep.subr.mxu0 0.0
        %376 = vmatpush1.msra.mxu0 0.0
        %377 = vmatprep.subr.mxu0 0.0
        %378 = vmatpush1.msra.mxu0 0.0
        %379 = vmatprep.subr.mxu0 0.0
        %380 = vmatpush1.msra.mxu0 0.0
        %381 = vmatprep.subr.mxu0 0.0
        %382 = vmatpush1.msra.mxu0 0.0
        %383 = vmatprep.subr.mxu0 0.0
        %384 = vmatpush1.msra.mxu0 0.0
        %385 = vmatprep.subr.mxu0 0.0
        %386 = vmatpush1.msra.mxu0 0.0
        %387 = vmatprep.mubr.f32.mxu0 0.0
        %v388 = vand.u32 %v315, 4294901760
        %v389 = vsub.f32 %v315, %v388
        %v390 = vand.u32 %v389, 4294901760
        %v391 = vsub.f32 %v389, %v390
        %v392 = vand.u32 %v391, 4294901760
        %393 = vmatmul.mubr.f32.gmra.mrb[0].mxu0 %v392
        %v394 = vpop.f32.mrb[0].mxu0
        %v395 = vadd.f32 %v311, %v394
        %v396 = vpop.f32.mrb[0].mxu0
        %397 = vmatprep.mubr.f32.mxu0 0.0
        %v398 = vand.u32 %v318, 4294901760
        %v399 = vsub.f32 %v318, %v398
        %v400 = vand.u32 %v399, 4294901760
        %v401 = vsub.f32 %v399, %v400
        %v402 = vand.u32 %v401, 4294901760
        %403 = vmatmul.mubr.f32.gmra.mrb[0].mxu0 %v402
        %v404 = vpop.f32.mrb[0].mxu0
        %v405 = vadd.f32 %v311, %v404
        %v406 = vpop.f32.mrb[0].mxu0
        %407 = vdwg.mxu0
        %408 = vmatprep.subr.mxu0 0.0
        %v409 = vand.u32 %v303, 4294901760
        %v410 = vsub.f32 %v303, %v409
        %v411 = vand.u32 %v410, 4294901760
        %v412 = vsub.f32 %v410, %v411
        %v413 = vand.u32 %v412, 4294901760
        %414 = vmatpush1.msra.mxu0 %v413
        %415 = vmatprep.subr.mxu0 0.0
        %v416 = vand.u32 %v304, 4294901760
        %v417 = vsub.f32 %v304, %v416
        %v418 = vand.u32 %v417, 4294901760
        %v419 = vsub.f32 %v417, %v418
        %v420 = vand.u32 %v419, 4294901760
        %421 = vmatpush1.msra.mxu0 %v420
        %422 = vmatprep.subr.mxu0 0.0
        %v423 = vand.u32 %v305, 4294901760
        %v424 = vsub.f32 %v305, %v423
        %v425 = vand.u32 %v424, 4294901760
        %v426 = vsub.f32 %v424, %v425
        %v427 = vand.u32 %v426, 4294901760
        %428 = vmatpush1.msra.mxu0 %v427
        %429 = vmatprep.subr.mxu0 0.0
        %430 = vmatpush1.msra.mxu0 0.0
        %431 = vmatprep.subr.mxu0 0.0
        %432 = vmatpush1.msra.mxu0 0.0
        %433 = vmatprep.subr.mxu0 0.0
        %434 = vmatpush1.msra.mxu0 0.0
        %435 = vmatprep.subr.mxu0 0.0
        %436 = vmatpush1.msra.mxu0 0.0
        %437 = vmatprep.subr.mxu0 0.0
        %438 = vmatpush1.msra.mxu0 0.0
        %439 = vmatprep.subr.mxu0 0.0
        %440 = vmatpush1.msra.mxu0 0.0
        %441 = vmatprep.subr.mxu0 0.0
        %442 = vmatpush1.msra.mxu0 0.0
        %443 = vmatprep.subr.mxu0 0.0
        %444 = vmatpush1.msra.mxu0 0.0
        %445 = vmatprep.subr.mxu0 0.0
        %446 = vmatpush1.msra.mxu0 0.0
        %447 = vmatprep.subr.mxu0 0.0
        %448 = vmatpush1.msra.mxu0 0.0
        %449 = vmatprep.subr.mxu0 0.0
        %450 = vmatpush1.msra.mxu0 0.0
        %451 = vmatprep.subr.mxu0 0.0
        %452 = vmatpush1.msra.mxu0 0.0
        %453 = vmatprep.subr.mxu0 0.0
        %454 = vmatpush1.msra.mxu0 0.0
        %455 = vmatprep.subr.mxu0 0.0
        %456 = vmatpush1.msra.mxu0 0.0
        %457 = vmatprep.subr.mxu0 0.0
        %458 = vmatpush1.msra.mxu0 0.0
        %459 = vmatprep.subr.mxu0 0.0
        %460 = vmatpush1.msra.mxu0 0.0
        %461 = vmatprep.subr.mxu0 0.0
        %462 = vmatpush1.msra.mxu0 0.0
        %463 = vmatprep.subr.mxu0 0.0
        %464 = vmatpush1.msra.mxu0 0.0
        %465 = vmatprep.subr.mxu0 0.0
        %466 = vmatpush1.msra.mxu0 0.0
        %467 = vmatprep.subr.mxu0 0.0
        %468 = vmatpush1.msra.mxu0 0.0
        %469 = vmatprep.subr.mxu0 0.0
        %470 = vmatpush1.msra.mxu0 0.0
        %471 = vmatprep.subr.mxu0 0.0
        %472 = vmatpush1.msra.mxu0 0.0
        %473 = vmatprep.subr.mxu0 0.0
        %474 = vmatpush1.msra.mxu0 0.0
        %475 = vmatprep.subr.mxu0 0.0
        %476 = vmatpush1.msra.mxu0 0.0
        %477 = vmatprep.subr.mxu0 0.0
        %478 = vmatpush1.msra.mxu0 0.0
        %479 = vmatprep.subr.mxu0 0.0
        %480 = vmatpush1.msra.mxu0 0.0
        %481 = vmatprep.subr.mxu0 0.0
        %482 = vmatpush1.msra.mxu0 0.0
        %483 = vmatprep.subr.mxu0 0.0
        %484 = vmatpush1.msra.mxu0 0.0
        %485 = vmatprep.subr.mxu0 0.0
        %486 = vmatpush1.msra.mxu0 0.0
        %487 = vmatprep.mubr.f32.mxu0 0.0
        %v488 = vand.u32 %v315, 4294901760
        %489 = vmatmul.mubr.f32.gmra.mrb[0].mxu0 %v488
        %v490 = vpop.f32.mrb[0].mxu0
        %v491 = vadd.f32 %v395, %v490
        %v492 = vpop.f32.mrb[0].mxu0
        %493 = vmatprep.mubr.f32.mxu0 0.0
        %v494 = vand.u32 %v318, 4294901760
        %495 = vmatmul.mubr.f32.gmra.mrb[0].mxu0 %v494
        %v496 = vpop.f32.mrb[0].mxu0
        %v497 = vadd.f32 %v405, %v496
        %v498 = vpop.f32.mrb[0].mxu0
        %499 = vdwg.mxu0
        %500 = vmatprep.subr.mxu0 0.0
        %v501 = vand.u32 %v303, 4294901760
        %v502 = vsub.f32 %v303, %v501
        %503 = vmatpush1.msra.mxu0 %v502
        %504 = vmatprep.subr.mxu0 0.0
        %v505 = vand.u32 %v304, 4294901760
        %v506 = vsub.f32 %v304, %v505
        %507 = vmatpush1.msra.mxu0 %v506
        %508 = vmatprep.subr.mxu0 0.0
        %v509 = vand.u32 %v305, 4294901760
        %v510 = vsub.f32 %v305, %v509
        %511 = vmatpush1.msra.mxu0 %v510
        %512 = vmatprep.subr.mxu0 0.0
        %513 = vmatpush1.msra.mxu0 0.0
        %514 = vmatprep.subr.mxu0 0.0
        %515 = vmatpush1.msra.mxu0 0.0
        %516 = vmatprep.subr.mxu0 0.0
        %517 = vmatpush1.msra.mxu0 0.0
        %518 = vmatprep.subr.mxu0 0.0
        %519 = vmatpush1.msra.mxu0 0.0
        %520 = vmatprep.subr.mxu0 0.0
        %521 = vmatpush1.msra.mxu0 0.0
        %522 = vmatprep.subr.mxu0 0.0
        %523 = vmatpush1.msra.mxu0 0.0
        %524 = vmatprep.subr.mxu0 0.0
        %525 = vmatpush1.msra.mxu0 0.0
        %526 = vmatprep.subr.mxu0 0.0
        %527 = vmatpush1.msra.mxu0 0.0
        %528 = vmatprep.subr.mxu0 0.0
        %529 = vmatpush1.msra.mxu0 0.0
        %530 = vmatprep.subr.mxu0 0.0
        %531 = vmatpush1.msra.mxu0 0.0
        %532 = vmatprep.subr.mxu0 0.0
        %533 = vmatpush1.msra.mxu0 0.0
        %534 = vmatprep.subr.mxu0 0.0
        %535 = vmatpush1.msra.mxu0 0.0
        %536 = vmatprep.subr.mxu0 0.0
        %537 = vmatpush1.msra.mxu0 0.0
        %538 = vmatprep.subr.mxu0 0.0
        %539 = vmatpush1.msra.mxu0 0.0
        %540 = vmatprep.subr.mxu0 0.0
        %541 = vmatpush1.msra.mxu0 0.0
        %542 = vmatprep.subr.mxu0 0.0
        %543 = vmatpush1.msra.mxu0 0.0
        %544 = vmatprep.subr.mxu0 0.0
        %545 = vmatpush1.msra.mxu0 0.0
        %546 = vmatprep.subr.mxu0 0.0
        %547 = vmatpush1.msra.mxu0 0.0
        %548 = vmatprep.subr.mxu0 0.0
        %549 = vmatpush1.msra.mxu0 0.0
        %550 = vmatprep.subr.mxu0 0.0
        %551 = vmatpush1.msra.mxu0 0.0
        %552 = vmatprep.subr.mxu0 0.0
        %553 = vmatpush1.msra.mxu0 0.0
        %554 = vmatprep.subr.mxu0 0.0
        %555 = vmatpush1.msra.mxu0 0.0
        %556 = vmatprep.subr.mxu0 0.0
        %557 = vmatpush1.msra.mxu0 0.0
        %558 = vmatprep.subr.mxu0 0.0
        %559 = vmatpush1.msra.mxu0 0.0
        %560 = vmatprep.subr.mxu0 0.0
        %561 = vmatpush1.msra.mxu0 0.0
        %562 = vmatprep.subr.mxu0 0.0
        %563 = vmatpush1.msra.mxu0 0.0
        %564 = vmatprep.subr.mxu0 0.0
        %565 = vmatpush1.msra.mxu0 0.0
        %566 = vmatprep.subr.mxu0 0.0
        %567 = vmatpush1.msra.mxu0 0.0
        %568 = vmatprep.subr.mxu0 0.0
        %569 = vmatpush1.msra.mxu0 0.0
        %570 = vmatprep.mubr.f32.mxu0 0.0
        %v571 = vand.u32 %v315, 4294901760
        %v572 = vsub.f32 %v315, %v571
        %573 = vmatmul.mubr.f32.gmra.mrb[0].mxu0 %v572
        %v574 = vpop.f32.mrb[0].mxu0
        %v575 = vadd.f32 %v491, %v574
        %v576 = vpop.f32.mrb[0].mxu0
        %577 = vmatprep.mubr.f32.mxu0 0.0
        %v578 = vand.u32 %v318, 4294901760
        %v579 = vsub.f32 %v318, %v578
        %580 = vmatmul.mubr.f32.gmra.mrb[0].mxu0 %v579
        %v581 = vpop.f32.mrb[0].mxu0
        %v582 = vadd.f32 %v497, %v581
        %v583 = vpop.f32.mrb[0].mxu0
        %584 = vdwg.mxu0
        %585 = vmatprep.subr.mxu0 0.0
        %v586 = vand.u32 %v303, 4294901760
        %587 = vmatpush1.msra.mxu0 %v586
        %588 = vmatprep.subr.mxu0 0.0
        %v589 = vand.u32 %v304, 4294901760
        %590 = vmatpush1.msra.mxu0 %v589
        %591 = vmatprep.subr.mxu0 0.0
        %v592 = vand.u32 %v305, 4294901760
        %593 = vmatpush1.msra.mxu0 %v592
        %594 = vmatprep.subr.mxu0 0.0
        %595 = vmatpush1.msra.mxu0 0.0
        %596 = vmatprep.subr.mxu0 0.0
        %597 = vmatpush1.msra.mxu0 0.0
        %598 = vmatprep.subr.mxu0 0.0
        %599 = vmatpush1.msra.mxu0 0.0
        %600 = vmatprep.subr.mxu0 0.0
        %601 = vmatpush1.msra.mxu0 0.0
        %602 = vmatprep.subr.mxu0 0.0
        %603 = vmatpush1.msra.mxu0 0.0
        %604 = vmatprep.subr.mxu0 0.0
        %605 = vmatpush1.msra.mxu0 0.0
        %606 = vmatprep.subr.mxu0 0.0
        %607 = vmatpush1.msra.mxu0 0.0
        %608 = vmatprep.subr.mxu0 0.0
        %609 = vmatpush1.msra.mxu0 0.0
        %610 = vmatprep.subr.mxu0 0.0
        %611 = vmatpush1.msra.mxu0 0.0
        %612 = vmatprep.subr.mxu0 0.0
        %613 = vmatpush1.msra.mxu0 0.0
        %614 = vmatprep.subr.mxu0 0.0
        %615 = vmatpush1.msra.mxu0 0.0
        %616 = vmatprep.subr.mxu0 0.0
        %617 = vmatpush1.msra.mxu0 0.0
        %618 = vmatprep.subr.mxu0 0.0
        %619 = vmatpush1.msra.mxu0 0.0
        %620 = vmatprep.subr.mxu0 0.0
        %621 = vmatpush1.msra.mxu0 0.0
        %622 = vmatprep.subr.mxu0 0.0
        %623 = vmatpush1.msra.mxu0 0.0
        %624 = vmatprep.subr.mxu0 0.0
        %625 = vmatpush1.msra.mxu0 0.0
        %626 = vmatprep.subr.mxu0 0.0
        %627 = vmatpush1.msra.mxu0 0.0
        %628 = vmatprep.subr.mxu0 0.0
        %629 = vmatpush1.msra.mxu0 0.0
        %630 = vmatprep.subr.mxu0 0.0
        %631 = vmatpush1.msra.mxu0 0.0
        %632 = vmatprep.subr.mxu0 0.0
        %633 = vmatpush1.msra.mxu0 0.0
        %634 = vmatprep.subr.mxu0 0.0
        %635 = vmatpush1.msra.mxu0 0.0
        %636 = vmatprep.subr.mxu0 0.0
        %637 = vmatpush1.msra.mxu0 0.0
        %638 = vmatprep.subr.mxu0 0.0
        %639 = vmatpush1.msra.mxu0 0.0
        %640 = vmatprep.subr.mxu0 0.0
        %641 = vmatpush1.msra.mxu0 0.0
        %642 = vmatprep.subr.mxu0 0.0
        %643 = vmatpush1.msra.mxu0 0.0
        %644 = vmatprep.subr.mxu0 0.0
        %645 = vmatpush1.msra.mxu0 0.0
        %646 = vmatprep.subr.mxu0 0.0
        %647 = vmatpush1.msra.mxu0 0.0
        %648 = vmatprep.subr.mxu0 0.0
        %649 = vmatpush1.msra.mxu0 0.0
        %650 = vmatprep.subr.mxu0 0.0
        %651 = vmatpush1.msra.mxu0 0.0
        %652 = vmatprep.mubr.f32.mxu0 0.0
        %v653 = vand.u32 %v315, 4294901760
        %v654 = vsub.f32 %v315, %v653
        %v655 = vand.u32 %v654, 4294901760
        %656 = vmatmul.mubr.f32.gmra.mrb[0].mxu0 %v655
        %v657 = vpop.f32.mrb[0].mxu0
        %v658 = vadd.f32 %v575, %v657
        %v659 = vpop.f32.mrb[0].mxu0
        %660 = vmatprep.mubr.f32.mxu0 0.0
        %v661 = vand.u32 %v318, 4294901760
        %v662 = vsub.f32 %v318, %v661
        %v663 = vand.u32 %v662, 4294901760
        %664 = vmatmul.mubr.f32.gmra.mrb[0].mxu0 %v663
        %v665 = vpop.f32.mrb[0].mxu0
        %v666 = vadd.f32 %v582, %v665
        %v667 = vpop.f32.mrb[0].mxu0
        %668 = vdwg.mxu0
        %669 = vmatprep.subr.mxu0 0.0
        %v670 = vand.u32 %v303, 4294901760
        %v671 = vsub.f32 %v303, %v670
        %v672 = vand.u32 %v671, 4294901760
        %673 = vmatpush1.msra.mxu0 %v672
        %674 = vmatprep.subr.mxu0 0.0
        %v675 = vand.u32 %v304, 4294901760
        %v676 = vsub.f32 %v304, %v675
        %v677 = vand.u32 %v676, 4294901760
        %678 = vmatpush1.msra.mxu0 %v677
        %679 = vmatprep.subr.mxu0 0.0
        %v680 = vand.u32 %v305, 4294901760
        %v681 = vsub.f32 %v305, %v680
        %v682 = vand.u32 %v681, 4294901760
        %683 = vmatpush1.msra.mxu0 %v682
        %684 = vmatprep.subr.mxu0 0.0
        %685 = vmatpush1.msra.mxu0 0.0
        %686 = vmatprep.subr.mxu0 0.0
        %687 = vmatpush1.msra.mxu0 0.0
        %688 = vmatprep.subr.mxu0 0.0
        %689 = vmatpush1.msra.mxu0 0.0
        %690 = vmatprep.subr.mxu0 0.0
        %691 = vmatpush1.msra.mxu0 0.0
        %692 = vmatprep.subr.mxu0 0.0
        %693 = vmatpush1.msra.mxu0 0.0
        %694 = vmatprep.subr.mxu0 0.0
        %695 = vmatpush1.msra.mxu0 0.0
        %696 = vmatprep.subr.mxu0 0.0
        %697 = vmatpush1.msra.mxu0 0.0
        %698 = vmatprep.subr.mxu0 0.0
        %699 = vmatpush1.msra.mxu0 0.0
        %700 = vmatprep.subr.mxu0 0.0
        %701 = vmatpush1.msra.mxu0 0.0
        %702 = vmatprep.subr.mxu0 0.0
        %703 = vmatpush1.msra.mxu0 0.0
        %704 = vmatprep.subr.mxu0 0.0
        %705 = vmatpush1.msra.mxu0 0.0
        %706 = vmatprep.subr.mxu0 0.0
        %707 = vmatpush1.msra.mxu0 0.0
        %708 = vmatprep.subr.mxu0 0.0
        %709 = vmatpush1.msra.mxu0 0.0
        %710 = vmatprep.subr.mxu0 0.0
        %711 = vmatpush1.msra.mxu0 0.0
        %712 = vmatprep.subr.mxu0 0.0
        %713 = vmatpush1.msra.mxu0 0.0
        %714 = vmatprep.subr.mxu0 0.0
        %715 = vmatpush1.msra.mxu0 0.0
        %716 = vmatprep.subr.mxu0 0.0
        %717 = vmatpush1.msra.mxu0 0.0
        %718 = vmatprep.subr.mxu0 0.0
        %719 = vmatpush1.msra.mxu0 0.0
        %720 = vmatprep.subr.mxu0 0.0
        %721 = vmatpush1.msra.mxu0 0.0
        %722 = vmatprep.subr.mxu0 0.0
        %723 = vmatpush1.msra.mxu0 0.0
        %724 = vmatprep.subr.mxu0 0.0
        %725 = vmatpush1.msra.mxu0 0.0
        %726 = vmatprep.subr.mxu0 0.0
        %727 = vmatpush1.msra.mxu0 0.0
        %728 = vmatprep.subr.mxu0 0.0
        %729 = vmatpush1.msra.mxu0 0.0
        %730 = vmatprep.subr.mxu0 0.0
        %731 = vmatpush1.msra.mxu0 0.0
        %732 = vmatprep.subr.mxu0 0.0
        %733 = vmatpush1.msra.mxu0 0.0
        %734 = vmatprep.subr.mxu0 0.0
        %735 = vmatpush1.msra.mxu0 0.0
        %736 = vmatprep.subr.mxu0 0.0
        %737 = vmatpush1.msra.mxu0 0.0
        %738 = vmatprep.subr.mxu0 0.0
        %739 = vmatpush1.msra.mxu0 0.0
        %740 = vmatprep.subr.mxu0 0.0
        %741 = vmatpush1.msra.mxu0 0.0
        %742 = vmatprep.mubr.f32.mxu0 0.0
        %v743 = vand.u32 %v315, 4294901760
        %744 = vmatmul.mubr.f32.gmra.mrb[0].mxu0 %v743
        %v745 = vpop.f32.mrb[0].mxu0
        %v746 = vadd.f32 %v658, %v745
        %v747 = vpop.f32.mrb[0].mxu0
        %748 = vmatprep.mubr.f32.mxu0 0.0
        %v749 = vand.u32 %v318, 4294901760
        %750 = vmatmul.mubr.f32.gmra.mrb[0].mxu0 %v749
        %v751 = vpop.f32.mrb[0].mxu0
        %v752 = vadd.f32 %v666, %v751
        %v753 = vpop.f32.mrb[0].mxu0
        %754 = vdwg.mxu0
        %755 = vmatprep.subr.mxu0 0.0
        %v756 = vand.u32 %v303, 4294901760
        %757 = vmatpush1.msra.mxu0 %v756
        %758 = vmatprep.subr.mxu0 0.0
        %v759 = vand.u32 %v304, 4294901760
        %760 = vmatpush1.msra.mxu0 %v759
        %761 = vmatprep.subr.mxu0 0.0
        %v762 = vand.u32 %v305, 4294901760
        %763 = vmatpush1.msra.mxu0 %v762
        %764 = vmatprep.subr.mxu0 0.0
        %765 = vmatpush1.msra.mxu0 0.0
        %766 = vmatprep.subr.mxu0 0.0
        %767 = vmatpush1.msra.mxu0 0.0
        %768 = vmatprep.subr.mxu0 0.0
        %769 = vmatpush1.msra.mxu0 0.0
        %770 = vmatprep.subr.mxu0 0.0
        %771 = vmatpush1.msra.mxu0 0.0
        %772 = vmatprep.subr.mxu0 0.0
        %773 = vmatpush1.msra.mxu0 0.0
        %774 = vmatprep.subr.mxu0 0.0
        %775 = vmatpush1.msra.mxu0 0.0
        %776 = vmatprep.subr.mxu0 0.0
        %777 = vmatpush1.msra.mxu0 0.0
        %778 = vmatprep.subr.mxu0 0.0
        %779 = vmatpush1.msra.mxu0 0.0
        %780 = vmatprep.subr.mxu0 0.0
        %781 = vmatpush1.msra.mxu0 0.0
        %782 = vmatprep.subr.mxu0 0.0
        %783 = vmatpush1.msra.mxu0 0.0
        %784 = vmatprep.subr.mxu0 0.0
        %785 = vmatpush1.msra.mxu0 0.0
        %786 = vmatprep.subr.mxu0 0.0
        %787 = vmatpush1.msra.mxu0 0.0
        %788 = vmatprep.subr.mxu0 0.0
        %789 = vmatpush1.msra.mxu0 0.0
        %790 = vmatprep.subr.mxu0 0.0
        %791 = vmatpush1.msra.mxu0 0.0
        %792 = vmatprep.subr.mxu0 0.0
        %793 = vmatpush1.msra.mxu0 0.0
        %794 = vmatprep.subr.mxu0 0.0
        %795 = vmatpush1.msra.mxu0 0.0
        %796 = vmatprep.subr.mxu0 0.0
        %797 = vmatpush1.msra.mxu0 0.0
        %798 = vmatprep.subr.mxu0 0.0
        %799 = vmatpush1.msra.mxu0 0.0
        %800 = vmatprep.subr.mxu0 0.0
        %801 = vmatpush1.msra.mxu0 0.0
        %802 = vmatprep.subr.mxu0 0.0
        %803 = vmatpush1.msra.mxu0 0.0
        %804 = vmatprep.subr.mxu0 0.0
        %805 = vmatpush1.msra.mxu0 0.0
        %806 = vmatprep.subr.mxu0 0.0
        %807 = vmatpush1.msra.mxu0 0.0
        %808 = vmatprep.subr.mxu0 0.0
        %809 = vmatpush1.msra.mxu0 0.0
        %810 = vmatprep.subr.mxu0 0.0
        %811 = vmatpush1.msra.mxu0 0.0
        %812 = vmatprep.subr.mxu0 0.0
        %813 = vmatpush1.msra.mxu0 0.0
        %814 = vmatprep.subr.mxu0 0.0
        %815 = vmatpush1.msra.mxu0 0.0
        %816 = vmatprep.subr.mxu0 0.0
        %817 = vmatpush1.msra.mxu0 0.0
        %818 = vmatprep.subr.mxu0 0.0
        %819 = vmatpush1.msra.mxu0 0.0
        %820 = vmatprep.subr.mxu0 0.0
        %821 = vmatpush1.msra.mxu0 0.0
        %822 = vmatprep.mubr.f32.mxu0 0.0
        %v823 = vand.u32 %v315, 4294901760
        %824 = vmatmul.mubr.f32.gmra.mrb[0].mxu0 %v823
        %v825 = vpop.f32.mrb[0].mxu0
        %v826 = vadd.f32 %v746, %v825
        %v827 = vpop.f32.mrb[0].mxu0
        %828 = vmatprep.mubr.f32.mxu0 0.0
        %v829 = vand.u32 %v318, 4294901760
        %830 = vmatmul.mubr.f32.gmra.mrb[0].mxu0 %v829
        %v831 = vpop.f32.mrb[0].mxu0
        %v832 = vadd.f32 %v752, %v831
        %v833 = vpop.f32.mrb[0].mxu0
        %834 = vdwg.mxu0
        %v835 = vmax.f32 %v826, 0.0
        %v836 = vmax.f32 %v832, 0.0
        %v837 = vrot.slane %v835, 7
        %v838 = vrot.slane %v836, 7
        %v839 = vsel %vm257, %v837, %v838
        %v840 = vsel %vm257, %v838, %v837
        %v841 = vsel %vm264, 0.0, %v840
        %v842 = vsel %vm265, 0.0, %v839
        %v843 = vrot.slane %v835, 1
        %v844 = vrot.slane %v836, 1
        %v845 = vsel %vm270, %v843, %v844
        %v846 = vsel %vm270, %v844, %v843
        %v847 = vsel %vm277, 0.0, %v845
        %v848 = vsel %vm278, 0.0, %v846
        %851 = vrot.lane.b32.xlu0 %v835, 32
        %v852 = vpop.permute.xlu0 %851
        %853 = vrot.lane.b32.xlu0 %v836, 32
        %v854 = vpop.permute.xlu0 %853
        %859 = vrot.lane.b32.xlu0 %v847, 64
        %v860 = vpop.permute.xlu0 %859
        %861 = vrot.lane.b32.xlu0 %v848, 64
        %v862 = vpop.permute.xlu0 %861
        %vm865 = vcmask 261120
        %v866 = vsel %vm865, %v841, %v852
        %v867 = vsel %vm865, %v842, %v854
        %vm868 = vcmask 523264
        %v869 = vsel %vm868, %v866, %v860
        %v870 = vsel %vm868, %v867, %v862
        %v871 = vld [vmem:[%s3] sm:$0xff]
        %v872 = vld [vmem:[%s3 + $0x8] sm:$0xff]
        %v873 = vld [vmem:[%s3 + $0x10] sm:$0xff]
        %v874 = vld [vmem:[%s3 + $0x18] sm:$0xff]
        %v875 = vld [vmem:[%s3 + $0x20] sm:$0xff]
        %v876 = vld [vmem:[%s3 + $0x28] sm:$0xff]
        %v877 = vld [vmem:[%s3 + $0x30] sm:$0xff]
        %v878 = vld [vmem:[%s3 + $0x38] sm:$0xff]
        %v879 = vld [vmem:[%s3 + $0x40] sm:$0xff]
        %v880 = vld [vmem:[%s3 + $0x48] sm:$0xff]
        %v881 = vld [vmem:[%s3 + $0x50] sm:$0xff]
        %v882 = vld [vmem:[%s3 + $0x58] sm:$0xff]
        %v883 = vld [vmem:[%s4] sm:$0x1]
        %v885 = vlaneseq
        %v886 = vshrl.u32 %v885, 7
        %v887 = vsub.s32 0, %v886
        %v888 = vrot.slane %v883, %v887
        %vm890 = vcmask 785408
        %v892 = vsel %vm890, %v869, 0
        %v895 = vsel %vm890, %v870, 0
        %897 = vmatprep.subr.mxu0 0.0
        %v898 = vand.u32 %v871, 4294901760
        %899 = vmatpush1.msra.mxu0 %v898
        %900 = vmatprep.subr.mxu0 0.0
        %v901 = vand.u32 %v872, 4294901760
        %902 = vmatpush1.msra.mxu0 %v901
        %903 = vmatprep.subr.mxu0 0.0
        %v904 = vand.u32 %v873, 4294901760
        %905 = vmatpush1.msra.mxu0 %v904
        %906 = vmatprep.subr.mxu0 0.0
        %v907 = vand.u32 %v874, 4294901760
        %908 = vmatpush1.msra.mxu0 %v907
        %909 = vmatprep.subr.mxu0 0.0
        %v910 = vand.u32 %v875, 4294901760
        %911 = vmatpush1.msra.mxu0 %v910
        %912 = vmatprep.subr.mxu0 0.0
        %v913 = vand.u32 %v876, 4294901760
        %914 = vmatpush1.msra.mxu0 %v913
        %915 = vmatprep.subr.mxu0 0.0
        %v916 = vand.u32 %v877, 4294901760
        %917 = vmatpush1.msra.mxu0 %v916
        %918 = vmatprep.subr.mxu0 0.0
        %v919 = vand.u32 %v878, 4294901760
        %920 = vmatpush1.msra.mxu0 %v919
        %921 = vmatprep.subr.mxu0 0.0
        %v922 = vand.u32 %v879, 4294901760
        %923 = vmatpush1.msra.mxu0 %v922
        %924 = vmatprep.subr.mxu0 0.0
        %v925 = vand.u32 %v880, 4294901760
        %926 = vmatpush1.msra.mxu0 %v925
        %927 = vmatprep.subr.mxu0 0.0
        %v928 = vand.u32 %v881, 4294901760
        %929 = vmatpush1.msra.mxu0 %v928
        %930 = vmatprep.subr.mxu0 0.0
        %v931 = vand.u32 %v882, 4294901760
        %932 = vmatpush1.msra.mxu0 %v931
        %933 = vmatprep.subr.mxu0 0.0
        %934 = vmatpush1.msra.mxu0 0.0
        %935 = vmatprep.subr.mxu0 0.0
        %936 = vmatpush1.msra.mxu0 0.0
        %937 = vmatprep.subr.mxu0 0.0
        %938 = vmatpush1.msra.mxu0 0.0
        %939 = vmatprep.subr.mxu0 0.0
        %940 = vmatpush1.msra.mxu0 0.0
        %941 = vmatprep.subr.mxu0 0.0
        %942 = vmatpush1.msra.mxu0 0.0
        %943 = vmatprep.subr.mxu0 0.0
        %944 = vmatpush1.msra.mxu0 0.0
        %945 = vmatprep.subr.mxu0 0.0
        %946 = vmatpush1.msra.mxu0 0.0
        %947 = vmatprep.subr.mxu0 0.0
        %948 = vmatpush1.msra.mxu0 0.0
        %949 = vmatprep.subr.mxu0 0.0
        %950 = vmatpush1.msra.mxu0 0.0
        %951 = vmatprep.subr.mxu0 0.0
        %952 = vmatpush1.msra.mxu0 0.0
        %953 = vmatprep.subr.mxu0 0.0
        %954 = vmatpush1.msra.mxu0 0.0
        %955 = vmatprep.subr.mxu0 0.0
        %956 = vmatpush1.msra.mxu0 0.0
        %957 = vmatprep.subr.mxu0 0.0
        %958 = vmatpush1.msra.mxu0 0.0
        %959 = vmatprep.subr.mxu0 0.0
        %960 = vmatpush1.msra.mxu0 0.0
        %961 = vmatprep.subr.mxu0 0.0
        %962 = vmatpush1.msra.mxu0 0.0
        %963 = vmatprep.subr.mxu0 0.0
        %964 = vmatpush1.msra.mxu0 0.0
        %965 = vmatprep.subr.mxu0 0.0
        %966 = vmatpush1.msra.mxu0 0.0
        %967 = vmatprep.subr.mxu0 0.0
        %968 = vmatpush1.msra.mxu0 0.0
        %969 = vmatprep.subr.mxu0 0.0
        %970 = vmatpush1.msra.mxu0 0.0
        %971 = vmatprep.subr.mxu0 0.0
        %972 = vmatpush1.msra.mxu0 0.0
        %973 = vmatprep.mubr.f32.mxu0 0.0
        %v974 = vand.u32 %v892, 4294901760
        %v975 = vsub.f32 %v892, %v974
        %v976 = vand.u32 %v975, 4294901760
        %v977 = vsub.f32 %v975, %v976
        %v978 = vand.u32 %v977, 4294901760
        %979 = vmatmul.mubr.f32.gmra.mrb[0].mxu0 %v978
        %v980 = vpop.f32.mrb[0].mxu0
        %v981 = vadd.f32 %v888, %v980
        %v982 = vpop.f32.mrb[0].mxu0
        %983 = vmatprep.mubr.f32.mxu0 0.0
        %v984 = vand.u32 %v895, 4294901760
        %v985 = vsub.f32 %v895, %v984
        %v986 = vand.u32 %v985, 4294901760
        %v987 = vsub.f32 %v985, %v986
        %v988 = vand.u32 %v987, 4294901760
        %989 = vmatmul.mubr.f32.gmra.mrb[0].mxu0 %v988
        %v990 = vpop.f32.mrb[0].mxu0
        %v991 = vadd.f32 %v888, %v990
        %v992 = vpop.f32.mrb[0].mxu0
        %993 = vdwg.mxu0
        %994 = vmatprep.subr.mxu0 0.0
        %v995 = vand.u32 %v871, 4294901760
        %v996 = vsub.f32 %v871, %v995
        %v997 = vand.u32 %v996, 4294901760
        %v998 = vsub.f32 %v996, %v997
        %v999 = vand.u32 %v998, 4294901760
        %1000 = vmatpush1.msra.mxu0 %v999
        %1001 = vmatprep.subr.mxu0 0.0
        %v1002 = vand.u32 %v872, 4294901760
        %v1003 = vsub.f32 %v872, %v1002
        %v1004 = vand.u32 %v1003, 4294901760
        %v1005 = vsub.f32 %v1003, %v1004
        %v1006 = vand.u32 %v1005, 4294901760
        %1007 = vmatpush1.msra.mxu0 %v1006
        %1008 = vmatprep.subr.mxu0 0.0
        %v1009 = vand.u32 %v873, 4294901760
        %v1010 = vsub.f32 %v873, %v1009
        %v1011 = vand.u32 %v1010, 4294901760
        %v1012 = vsub.f32 %v1010, %v1011
        %v1013 = vand.u32 %v1012, 4294901760
        %1014 = vmatpush1.msra.mxu0 %v1013
        %1015 = vmatprep.subr.mxu0 0.0
        %v1016 = vand.u32 %v874, 4294901760
        %v1017 = vsub.f32 %v874, %v1016
        %v1018 = vand.u32 %v1017, 4294901760
        %v1019 = vsub.f32 %v1017, %v1018
        %v1020 = vand.u32 %v1019, 4294901760
        %1021 = vmatpush1.msra.mxu0 %v1020
        %1022 = vmatprep.subr.mxu0 0.0
        %v1023 = vand.u32 %v875, 4294901760
        %v1024 = vsub.f32 %v875, %v1023
        %v1025 = vand.u32 %v1024, 4294901760
        %v1026 = vsub.f32 %v1024, %v1025
        %v1027 = vand.u32 %v1026, 4294901760
        %1028 = vmatpush1.msra.mxu0 %v1027
        %1029 = vmatprep.subr.mxu0 0.0
        %v1030 = vand.u32 %v876, 4294901760
        %v1031 = vsub.f32 %v876, %v1030
        %v1032 = vand.u32 %v1031, 4294901760
        %v1033 = vsub.f32 %v1031, %v1032
        %v1034 = vand.u32 %v1033, 4294901760
        %1035 = vmatpush1.msra.mxu0 %v1034
        %1036 = vmatprep.subr.mxu0 0.0
        %v1037 = vand.u32 %v877, 4294901760
        %v1038 = vsub.f32 %v877, %v1037
        %v1039 = vand.u32 %v1038, 4294901760
        %v1040 = vsub.f32 %v1038, %v1039
        %v1041 = vand.u32 %v1040, 4294901760
        %1042 = vmatpush1.msra.mxu0 %v1041
        %1043 = vmatprep.subr.mxu0 0.0
        %v1044 = vand.u32 %v878, 4294901760
        %v1045 = vsub.f32 %v878, %v1044
        %v1046 = vand.u32 %v1045, 4294901760
        %v1047 = vsub.f32 %v1045, %v1046
        %v1048 = vand.u32 %v1047, 4294901760
        %1049 = vmatpush1.msra.mxu0 %v1048
        %1050 = vmatprep.subr.mxu0 0.0
        %v1051 = vand.u32 %v879, 4294901760
        %v1052 = vsub.f32 %v879, %v1051
        %v1053 = vand.u32 %v1052, 4294901760
        %v1054 = vsub.f32 %v1052, %v1053
        %v1055 = vand.u32 %v1054, 4294901760
        %1056 = vmatpush1.msra.mxu0 %v1055
        %1057 = vmatprep.subr.mxu0 0.0
        %v1058 = vand.u32 %v880, 4294901760
        %v1059 = vsub.f32 %v880, %v1058
        %v1060 = vand.u32 %v1059, 4294901760
        %v1061 = vsub.f32 %v1059, %v1060
        %v1062 = vand.u32 %v1061, 4294901760
        %1063 = vmatpush1.msra.mxu0 %v1062
        %1064 = vmatprep.subr.mxu0 0.0
        %v1065 = vand.u32 %v881, 4294901760
        %v1066 = vsub.f32 %v881, %v1065
        %v1067 = vand.u32 %v1066, 4294901760
        %v1068 = vsub.f32 %v1066, %v1067
        %v1069 = vand.u32 %v1068, 4294901760
        %1070 = vmatpush1.msra.mxu0 %v1069
        %1071 = vmatprep.subr.mxu0 0.0
        %v1072 = vand.u32 %v882, 4294901760
        %v1073 = vsub.f32 %v882, %v1072
        %v1074 = vand.u32 %v1073, 4294901760
        %v1075 = vsub.f32 %v1073, %v1074
        %v1076 = vand.u32 %v1075, 4294901760
        %1077 = vmatpush1.msra.mxu0 %v1076
        %1078 = vmatprep.subr.mxu0 0.0
        %1079 = vmatpush1.msra.mxu0 0.0
        %1080 = vmatprep.subr.mxu0 0.0
        %1081 = vmatpush1.msra.mxu0 0.0
        %1082 = vmatprep.subr.mxu0 0.0
        %1083 = vmatpush1.msra.mxu0 0.0
        %1084 = vmatprep.subr.mxu0 0.0
        %1085 = vmatpush1.msra.mxu0 0.0
        %1086 = vmatprep.subr.mxu0 0.0
        %1087 = vmatpush1.msra.mxu0 0.0
        %1088 = vmatprep.subr.mxu0 0.0
        %1089 = vmatpush1.msra.mxu0 0.0
        %1090 = vmatprep.subr.mxu0 0.0
        %1091 = vmatpush1.msra.mxu0 0.0
        %1092 = vmatprep.subr.mxu0 0.0
        %1093 = vmatpush1.msra.mxu0 0.0
        %1094 = vmatprep.subr.mxu0 0.0
        %1095 = vmatpush1.msra.mxu0 0.0
        %1096 = vmatprep.subr.mxu0 0.0
        %1097 = vmatpush1.msra.mxu0 0.0
        %1098 = vmatprep.subr.mxu0 0.0
        %1099 = vmatpush1.msra.mxu0 0.0
        %1100 = vmatprep.subr.mxu0 0.0
        %1101 = vmatpush1.msra.mxu0 0.0
        %1102 = vmatprep.subr.mxu0 0.0
        %1103 = vmatpush1.msra.mxu0 0.0
        %1104 = vmatprep.subr.mxu0 0.0
        %1105 = vmatpush1.msra.mxu0 0.0
        %1106 = vmatprep.subr.mxu0 0.0
        %1107 = vmatpush1.msra.mxu0 0.0
        %1108 = vmatprep.subr.mxu0 0.0
        %1109 = vmatpush1.msra.mxu0 0.0
        %1110 = vmatprep.subr.mxu0 0.0
        %1111 = vmatpush1.msra.mxu0 0.0
        %1112 = vmatprep.subr.mxu0 0.0
        %1113 = vmatpush1.msra.mxu0 0.0
        %1114 = vmatprep.subr.mxu0 0.0
        %1115 = vmatpush1.msra.mxu0 0.0
        %1116 = vmatprep.subr.mxu0 0.0
        %1117 = vmatpush1.msra.mxu0 0.0
        %1118 = vmatprep.mubr.f32.mxu0 0.0
        %v1119 = vand.u32 %v892, 4294901760
        %1120 = vmatmul.mubr.f32.gmra.mrb[0].mxu0 %v1119
        %v1121 = vpop.f32.mrb[0].mxu0
        %v1122 = vadd.f32 %v981, %v1121
        %v1123 = vpop.f32.mrb[0].mxu0
        %1124 = vmatprep.mubr.f32.mxu0 0.0
        %v1125 = vand.u32 %v895, 4294901760
        %1126 = vmatmul.mubr.f32.gmra.mrb[0].mxu0 %v1125
        %v1127 = vpop.f32.mrb[0].mxu0
        %v1128 = vadd.f32 %v991, %v1127
        %v1129 = vpop.f32.mrb[0].mxu0
        %1130 = vdwg.mxu0
        %1131 = vmatprep.subr.mxu0 0.0
        %v1132 = vand.u32 %v871, 4294901760
        %v1133 = vsub.f32 %v871, %v1132
        %1134 = vmatpush1.msra.mxu0 %v1133
        %1135 = vmatprep.subr.mxu0 0.0
        %v1136 = vand.u32 %v872, 4294901760
        %v1137 = vsub.f32 %v872, %v1136
        %1138 = vmatpush1.msra.mxu0 %v1137
        %1139 = vmatprep.subr.mxu0 0.0
        %v1140 = vand.u32 %v873, 4294901760
        %v1141 = vsub.f32 %v873, %v1140
        %1142 = vmatpush1.msra.mxu0 %v1141
        %1143 = vmatprep.subr.mxu0 0.0
        %v1144 = vand.u32 %v874, 4294901760
        %v1145 = vsub.f32 %v874, %v1144
        %1146 = vmatpush1.msra.mxu0 %v1145
        %1147 = vmatprep.subr.mxu0 0.0
        %v1148 = vand.u32 %v875, 4294901760
        %v1149 = vsub.f32 %v875, %v1148
        %1150 = vmatpush1.msra.mxu0 %v1149
        %1151 = vmatprep.subr.mxu0 0.0
        %v1152 = vand.u32 %v876, 4294901760
        %v1153 = vsub.f32 %v876, %v1152
        %1154 = vmatpush1.msra.mxu0 %v1153
        %1155 = vmatprep.subr.mxu0 0.0
        %v1156 = vand.u32 %v877, 4294901760
        %v1157 = vsub.f32 %v877, %v1156
        %1158 = vmatpush1.msra.mxu0 %v1157
        %1159 = vmatprep.subr.mxu0 0.0
        %v1160 = vand.u32 %v878, 4294901760
        %v1161 = vsub.f32 %v878, %v1160
        %1162 = vmatpush1.msra.mxu0 %v1161
        %1163 = vmatprep.subr.mxu0 0.0
        %v1164 = vand.u32 %v879, 4294901760
        %v1165 = vsub.f32 %v879, %v1164
        %1166 = vmatpush1.msra.mxu0 %v1165
        %1167 = vmatprep.subr.mxu0 0.0
        %v1168 = vand.u32 %v880, 4294901760
        %v1169 = vsub.f32 %v880, %v1168
        %1170 = vmatpush1.msra.mxu0 %v1169
        %1171 = vmatprep.subr.mxu0 0.0
        %v1172 = vand.u32 %v881, 4294901760
        %v1173 = vsub.f32 %v881, %v1172
        %1174 = vmatpush1.msra.mxu0 %v1173
        %1175 = vmatprep.subr.mxu0 0.0
        %v1176 = vand.u32 %v882, 4294901760
        %v1177 = vsub.f32 %v882, %v1176
        %1178 = vmatpush1.msra.mxu0 %v1177
        %1179 = vmatprep.subr.mxu0 0.0
        %1180 = vmatpush1.msra.mxu0 0.0
        %1181 = vmatprep.subr.mxu0 0.0
        %1182 = vmatpush1.msra.mxu0 0.0
        %1183 = vmatprep.subr.mxu0 0.0
        %1184 = vmatpush1.msra.mxu0 0.0
        %1185 = vmatprep.subr.mxu0 0.0
        %1186 = vmatpush1.msra.mxu0 0.0
        %1187 = vmatprep.subr.mxu0 0.0
        %1188 = vmatpush1.msra.mxu0 0.0
        %1189 = vmatprep.subr.mxu0 0.0
        %1190 = vmatpush1.msra.mxu0 0.0
        %1191 = vmatprep.subr.mxu0 0.0
        %1192 = vmatpush1.msra.mxu0 0.0
        %1193 = vmatprep.subr.mxu0 0.0
        %1194 = vmatpush1.msra.mxu0 0.0
        %1195 = vmatprep.subr.mxu0 0.0
        %1196 = vmatpush1.msra.mxu0 0.0
        %1197 = vmatprep.subr.mxu0 0.0
        %1198 = vmatpush1.msra.mxu0 0.0
        %1199 = vmatprep.subr.mxu0 0.0
        %1200 = vmatpush1.msra.mxu0 0.0
        %1201 = vmatprep.subr.mxu0 0.0
        %1202 = vmatpush1.msra.mxu0 0.0
        %1203 = vmatprep.subr.mxu0 0.0
        %1204 = vmatpush1.msra.mxu0 0.0
        %1205 = vmatprep.subr.mxu0 0.0
        %1206 = vmatpush1.msra.mxu0 0.0
        %1207 = vmatprep.subr.mxu0 0.0
        %1208 = vmatpush1.msra.mxu0 0.0
        %1209 = vmatprep.subr.mxu0 0.0
        %1210 = vmatpush1.msra.mxu0 0.0
        %1211 = vmatprep.subr.mxu0 0.0
        %1212 = vmatpush1.msra.mxu0 0.0
        %1213 = vmatprep.subr.mxu0 0.0
        %1214 = vmatpush1.msra.mxu0 0.0
        %1215 = vmatprep.subr.mxu0 0.0
        %1216 = vmatpush1.msra.mxu0 0.0
        %1217 = vmatprep.subr.mxu0 0.0
        %1218 = vmatpush1.msra.mxu0 0.0
        %1219 = vmatprep.mubr.f32.mxu0 0.0
        %v1220 = vand.u32 %v892, 4294901760
        %v1221 = vsub.f32 %v892, %v1220
        %1222 = vmatmul.mubr.f32.gmra.mrb[0].mxu0 %v1221
        %v1223 = vpop.f32.mrb[0].mxu0
        %v1224 = vadd.f32 %v1122, %v1223
        %v1225 = vpop.f32.mrb[0].mxu0
        %1226 = vmatprep.mubr.f32.mxu0 0.0
        %v1227 = vand.u32 %v895, 4294901760
        %v1228 = vsub.f32 %v895, %v1227
        %1229 = vmatmul.mubr.f32.gmra.mrb[0].mxu0 %v1228
        %v1230 = vpop.f32.mrb[0].mxu0
        %v1231 = vadd.f32 %v1128, %v1230
        %v1232 = vpop.f32.mrb[0].mxu0
        %1233 = vdwg.mxu0
        %1234 = vmatprep.subr.mxu0 0.0
        %v1235 = vand.u32 %v871, 4294901760
        %1236 = vmatpush1.msra.mxu0 %v1235
        %1237 = vmatprep.subr.mxu0 0.0
        %v1238 = vand.u32 %v872, 4294901760
        %1239 = vmatpush1.msra.mxu0 %v1238
        %1240 = vmatprep.subr.mxu0 0.0
        %v1241 = vand.u32 %v873, 4294901760
        %1242 = vmatpush1.msra.mxu0 %v1241
        %1243 = vmatprep.subr.mxu0 0.0
        %v1244 = vand.u32 %v874, 4294901760
        %1245 = vmatpush1.msra.mxu0 %v1244
        %1246 = vmatprep.subr.mxu0 0.0
        %v1247 = vand.u32 %v875, 4294901760
        %1248 = vmatpush1.msra.mxu0 %v1247
        %1249 = vmatprep.subr.mxu0 0.0
        %v1250 = vand.u32 %v876, 4294901760
        %1251 = vmatpush1.msra.mxu0 %v1250
        %1252 = vmatprep.subr.mxu0 0.0
        %v1253 = vand.u32 %v877, 4294901760
        %1254 = vmatpush1.msra.mxu0 %v1253
        %1255 = vmatprep.subr.mxu0 0.0
        %v1256 = vand.u32 %v878, 4294901760
        %1257 = vmatpush1.msra.mxu0 %v1256
        %1258 = vmatprep.subr.mxu0 0.0
        %v1259 = vand.u32 %v879, 4294901760
        %1260 = vmatpush1.msra.mxu0 %v1259
        %1261 = vmatprep.subr.mxu0 0.0
        %v1262 = vand.u32 %v880, 4294901760
        %1263 = vmatpush1.msra.mxu0 %v1262
        %1264 = vmatprep.subr.mxu0 0.0
        %v1265 = vand.u32 %v881, 4294901760
        %1266 = vmatpush1.msra.mxu0 %v1265
        %1267 = vmatprep.subr.mxu0 0.0
        %v1268 = vand.u32 %v882, 4294901760
        %1269 = vmatpush1.msra.mxu0 %v1268
        %1270 = vmatprep.subr.mxu0 0.0
        %1271 = vmatpush1.msra.mxu0 0.0
        %1272 = vmatprep.subr.mxu0 0.0
        %1273 = vmatpush1.msra.mxu0 0.0
        %1274 = vmatprep.subr.mxu0 0.0
        %1275 = vmatpush1.msra.mxu0 0.0
        %1276 = vmatprep.subr.mxu0 0.0
        %1277 = vmatpush1.msra.mxu0 0.0
        %1278 = vmatprep.subr.mxu0 0.0
        %1279 = vmatpush1.msra.mxu0 0.0
        %1280 = vmatprep.subr.mxu0 0.0
        %1281 = vmatpush1.msra.mxu0 0.0
        %1282 = vmatprep.subr.mxu0 0.0
        %1283 = vmatpush1.msra.mxu0 0.0
        %1284 = vmatprep.subr.mxu0 0.0
        %1285 = vmatpush1.msra.mxu0 0.0
        %1286 = vmatprep.subr.mxu0 0.0
        %1287 = vmatpush1.msra.mxu0 0.0
        %1288 = vmatprep.subr.mxu0 0.0
        %1289 = vmatpush1.msra.mxu0 0.0
        %1290 = vmatprep.subr.mxu0 0.0
        %1291 = vmatpush1.msra.mxu0 0.0
        %1292 = vmatprep.subr.mxu0 0.0
        %1293 = vmatpush1.msra.mxu0 0.0
        %1294 = vmatprep.subr.mxu0 0.0
        %1295 = vmatpush1.msra.mxu0 0.0
        %1296 = vmatprep.subr.mxu0 0.0
        %1297 = vmatpush1.msra.mxu0 0.0
        %1298 = vmatprep.subr.mxu0 0.0
        %1299 = vmatpush1.msra.mxu0 0.0
        %1300 = vmatprep.subr.mxu0 0.0
        %1301 = vmatpush1.msra.mxu0 0.0
        %1302 = vmatprep.subr.mxu0 0.0
        %1303 = vmatpush1.msra.mxu0 0.0
        %1304 = vmatprep.subr.mxu0 0.0
        %1305 = vmatpush1.msra.mxu0 0.0
        %1306 = vmatprep.subr.mxu0 0.0
        %1307 = vmatpush1.msra.mxu0 0.0
        %1308 = vmatprep.subr.mxu0 0.0
        %1309 = vmatpush1.msra.mxu0 0.0
        %1310 = vmatprep.mubr.f32.mxu0 0.0
        %v1311 = vand.u32 %v892, 4294901760
        %v1312 = vsub.f32 %v892, %v1311
        %v1313 = vand.u32 %v1312, 4294901760
        %1314 = vmatmul.mubr.f32.gmra.mrb[0].mxu0 %v1313
        %v1315 = vpop.f32.mrb[0].mxu0
        %v1316 = vadd.f32 %v1224, %v1315
        %v1317 = vpop.f32.mrb[0].mxu0
        %1318 = vmatprep.mubr.f32.mxu0 0.0
        %v1319 = vand.u32 %v895, 4294901760
        %v1320 = vsub.f32 %v895, %v1319
        %v1321 = vand.u32 %v1320, 4294901760
        %1322 = vmatmul.mubr.f32.gmra.mrb[0].mxu0 %v1321
        %v1323 = vpop.f32.mrb[0].mxu0
        %v1324 = vadd.f32 %v1231, %v1323
        %v1325 = vpop.f32.mrb[0].mxu0
        %1326 = vdwg.mxu0
        %1327 = vmatprep.subr.mxu0 0.0
        %v1328 = vand.u32 %v871, 4294901760
        %v1329 = vsub.f32 %v871, %v1328
        %v1330 = vand.u32 %v1329, 4294901760
        %1331 = vmatpush1.msra.mxu0 %v1330
        %1332 = vmatprep.subr.mxu0 0.0
        %v1333 = vand.u32 %v872, 4294901760
        %v1334 = vsub.f32 %v872, %v1333
        %v1335 = vand.u32 %v1334, 4294901760
        %1336 = vmatpush1.msra.mxu0 %v1335
        %1337 = vmatprep.subr.mxu0 0.0
        %v1338 = vand.u32 %v873, 4294901760
        %v1339 = vsub.f32 %v873, %v1338
        %v1340 = vand.u32 %v1339, 4294901760
        %1341 = vmatpush1.msra.mxu0 %v1340
        %1342 = vmatprep.subr.mxu0 0.0
        %v1343 = vand.u32 %v874, 4294901760
        %v1344 = vsub.f32 %v874, %v1343
        %v1345 = vand.u32 %v1344, 4294901760
        %1346 = vmatpush1.msra.mxu0 %v1345
        %1347 = vmatprep.subr.mxu0 0.0
        %v1348 = vand.u32 %v875, 4294901760
        %v1349 = vsub.f32 %v875, %v1348
        %v1350 = vand.u32 %v1349, 4294901760
        %1351 = vmatpush1.msra.mxu0 %v1350
        %1352 = vmatprep.subr.mxu0 0.0
        %v1353 = vand.u32 %v876, 4294901760
        %v1354 = vsub.f32 %v876, %v1353
        %v1355 = vand.u32 %v1354, 4294901760
        %1356 = vmatpush1.msra.mxu0 %v1355
        %1357 = vmatprep.subr.mxu0 0.0
        %v1358 = vand.u32 %v877, 4294901760
        %v1359 = vsub.f32 %v877, %v1358
        %v1360 = vand.u32 %v1359, 4294901760
        %1361 = vmatpush1.msra.mxu0 %v1360
        %1362 = vmatprep.subr.mxu0 0.0
        %v1363 = vand.u32 %v878, 4294901760
        %v1364 = vsub.f32 %v878, %v1363
        %v1365 = vand.u32 %v1364, 4294901760
        %1366 = vmatpush1.msra.mxu0 %v1365
        %1367 = vmatprep.subr.mxu0 0.0
        %v1368 = vand.u32 %v879, 4294901760
        %v1369 = vsub.f32 %v879, %v1368
        %v1370 = vand.u32 %v1369, 4294901760
        %1371 = vmatpush1.msra.mxu0 %v1370
        %1372 = vmatprep.subr.mxu0 0.0
        %v1373 = vand.u32 %v880, 4294901760
        %v1374 = vsub.f32 %v880, %v1373
        %v1375 = vand.u32 %v1374, 4294901760
        %1376 = vmatpush1.msra.mxu0 %v1375
        %1377 = vmatprep.subr.mxu0 0.0
        %v1378 = vand.u32 %v881, 4294901760
        %v1379 = vsub.f32 %v881, %v1378
        %v1380 = vand.u32 %v1379, 4294901760
        %1381 = vmatpush1.msra.mxu0 %v1380
        %1382 = vmatprep.subr.mxu0 0.0
        %v1383 = vand.u32 %v882, 4294901760
        %v1384 = vsub.f32 %v882, %v1383
        %v1385 = vand.u32 %v1384, 4294901760
        %1386 = vmatpush1.msra.mxu0 %v1385
        %1387 = vmatprep.subr.mxu0 0.0
        %1388 = vmatpush1.msra.mxu0 0.0
        %1389 = vmatprep.subr.mxu0 0.0
        %1390 = vmatpush1.msra.mxu0 0.0
        %1391 = vmatprep.subr.mxu0 0.0
        %1392 = vmatpush1.msra.mxu0 0.0
        %1393 = vmatprep.subr.mxu0 0.0
        %1394 = vmatpush1.msra.mxu0 0.0
        %1395 = vmatprep.subr.mxu0 0.0
        %1396 = vmatpush1.msra.mxu0 0.0
        %1397 = vmatprep.subr.mxu0 0.0
        %1398 = vmatpush1.msra.mxu0 0.0
        %1399 = vmatprep.subr.mxu0 0.0
        %1400 = vmatpush1.msra.mxu0 0.0
        %1401 = vmatprep.subr.mxu0 0.0
        %1402 = vmatpush1.msra.mxu0 0.0
        %1403 = vmatprep.subr.mxu0 0.0
        %1404 = vmatpush1.msra.mxu0 0.0
        %1405 = vmatprep.subr.mxu0 0.0
        %1406 = vmatpush1.msra.mxu0 0.0
        %1407 = vmatprep.subr.mxu0 0.0
        %1408 = vmatpush1.msra.mxu0 0.0
        %1409 = vmatprep.subr.mxu0 0.0
        %1410 = vmatpush1.msra.mxu0 0.0
        %1411 = vmatprep.subr.mxu0 0.0
        %1412 = vmatpush1.msra.mxu0 0.0
        %1413 = vmatprep.subr.mxu0 0.0
        %1414 = vmatpush1.msra.mxu0 0.0
        %1415 = vmatprep.subr.mxu0 0.0
        %1416 = vmatpush1.msra.mxu0 0.0
        %1417 = vmatprep.subr.mxu0 0.0
        %1418 = vmatpush1.msra.mxu0 0.0
        %1419 = vmatprep.subr.mxu0 0.0
        %1420 = vmatpush1.msra.mxu0 0.0
        %1421 = vmatprep.subr.mxu0 0.0
        %1422 = vmatpush1.msra.mxu0 0.0
        %1423 = vmatprep.subr.mxu0 0.0
        %1424 = vmatpush1.msra.mxu0 0.0
        %1425 = vmatprep.subr.mxu0 0.0
        %1426 = vmatpush1.msra.mxu0 0.0
        %1427 = vmatprep.mubr.f32.mxu0 0.0
        %v1428 = vand.u32 %v892, 4294901760
        %1429 = vmatmul.mubr.f32.gmra.mrb[0].mxu0 %v1428
        %v1430 = vpop.f32.mrb[0].mxu0
        %v1431 = vadd.f32 %v1316, %v1430
        %v1432 = vpop.f32.mrb[0].mxu0
        %1433 = vmatprep.mubr.f32.mxu0 0.0
        %v1434 = vand.u32 %v895, 4294901760
        %1435 = vmatmul.mubr.f32.gmra.mrb[0].mxu0 %v1434
        %v1436 = vpop.f32.mrb[0].mxu0
        %v1437 = vadd.f32 %v1324, %v1436
        %v1438 = vpop.f32.mrb[0].mxu0
        %1439 = vdwg.mxu0
        %1440 = vmatprep.subr.mxu0 0.0
        %v1441 = vand.u32 %v871, 4294901760
        %1442 = vmatpush1.msra.mxu0 %v1441
        %1443 = vmatprep.subr.mxu0 0.0
        %v1444 = vand.u32 %v872, 4294901760
        %1445 = vmatpush1.msra.mxu0 %v1444
        %1446 = vmatprep.subr.mxu0 0.0
        %v1447 = vand.u32 %v873, 4294901760
        %1448 = vmatpush1.msra.mxu0 %v1447
        %1449 = vmatprep.subr.mxu0 0.0
        %v1450 = vand.u32 %v874, 4294901760
        %1451 = vmatpush1.msra.mxu0 %v1450
        %1452 = vmatprep.subr.mxu0 0.0
        %v1453 = vand.u32 %v875, 4294901760
        %1454 = vmatpush1.msra.mxu0 %v1453
        %1455 = vmatprep.subr.mxu0 0.0
        %v1456 = vand.u32 %v876, 4294901760
        %1457 = vmatpush1.msra.mxu0 %v1456
        %1458 = vmatprep.subr.mxu0 0.0
        %v1459 = vand.u32 %v877, 4294901760
        %1460 = vmatpush1.msra.mxu0 %v1459
        %1461 = vmatprep.subr.mxu0 0.0
        %v1462 = vand.u32 %v878, 4294901760
        %1463 = vmatpush1.msra.mxu0 %v1462
        %1464 = vmatprep.subr.mxu0 0.0
        %v1465 = vand.u32 %v879, 4294901760
        %1466 = vmatpush1.msra.mxu0 %v1465
        %1467 = vmatprep.subr.mxu0 0.0
        %v1468 = vand.u32 %v880, 4294901760
        %1469 = vmatpush1.msra.mxu0 %v1468
        %1470 = vmatprep.subr.mxu0 0.0
        %v1471 = vand.u32 %v881, 4294901760
        %1472 = vmatpush1.msra.mxu0 %v1471
        %1473 = vmatprep.subr.mxu0 0.0
        %v1474 = vand.u32 %v882, 4294901760
        %1475 = vmatpush1.msra.mxu0 %v1474
        %1476 = vmatprep.subr.mxu0 0.0
        %1477 = vmatpush1.msra.mxu0 0.0
        %1478 = vmatprep.subr.mxu0 0.0
        %1479 = vmatpush1.msra.mxu0 0.0
        %1480 = vmatprep.subr.mxu0 0.0
        %1481 = vmatpush1.msra.mxu0 0.0
        %1482 = vmatprep.subr.mxu0 0.0
        %1483 = vmatpush1.msra.mxu0 0.0
        %1484 = vmatprep.subr.mxu0 0.0
        %1485 = vmatpush1.msra.mxu0 0.0
        %1486 = vmatprep.subr.mxu0 0.0
        %1487 = vmatpush1.msra.mxu0 0.0
        %1488 = vmatprep.subr.mxu0 0.0
        %1489 = vmatpush1.msra.mxu0 0.0
        %1490 = vmatprep.subr.mxu0 0.0
        %1491 = vmatpush1.msra.mxu0 0.0
        %1492 = vmatprep.subr.mxu0 0.0
        %1493 = vmatpush1.msra.mxu0 0.0
        %1494 = vmatprep.subr.mxu0 0.0
        %1495 = vmatpush1.msra.mxu0 0.0
        %1496 = vmatprep.subr.mxu0 0.0
        %1497 = vmatpush1.msra.mxu0 0.0
        %1498 = vmatprep.subr.mxu0 0.0
        %1499 = vmatpush1.msra.mxu0 0.0
        %1500 = vmatprep.subr.mxu0 0.0
        %1501 = vmatpush1.msra.mxu0 0.0
        %1502 = vmatprep.subr.mxu0 0.0
        %1503 = vmatpush1.msra.mxu0 0.0
        %1504 = vmatprep.subr.mxu0 0.0
        %1505 = vmatpush1.msra.mxu0 0.0
        %1506 = vmatprep.subr.mxu0 0.0
        %1507 = vmatpush1.msra.mxu0 0.0
        %1508 = vmatprep.subr.mxu0 0.0
        %1509 = vmatpush1.msra.mxu0 0.0
        %1510 = vmatprep.subr.mxu0 0.0
        %1511 = vmatpush1.msra.mxu0 0.0
        %1512 = vmatprep.subr.mxu0 0.0
        %1513 = vmatpush1.msra.mxu0 0.0
        %1514 = vmatprep.subr.mxu0 0.0
        %1515 = vmatpush1.msra.mxu0 0.0
        %1516 = vmatprep.mubr.f32.mxu0 0.0
        %v1517 = vand.u32 %v892, 4294901760
        %1518 = vmatmul.mubr.f32.gmra.mrb[0].mxu0 %v1517
        %v1519 = vpop.f32.mrb[0].mxu0
        %v1520 = vadd.f32 %v1431, %v1519
        %v1521 = vpop.f32.mrb[0].mxu0
        %1522 = vmatprep.mubr.f32.mxu0 0.0
        %v1523 = vand.u32 %v895, 4294901760
        %1524 = vmatmul.mubr.f32.gmra.mrb[0].mxu0 %v1523
        %v1525 = vpop.f32.mrb[0].mxu0
        %v1526 = vadd.f32 %v1437, %v1525
        %v1527 = vpop.f32.mrb[0].mxu0
        %1528 = vdwg.mxu0
        %1529 = vst.msk [vmem:[%s218] sm:$0xff] %vm865, %v1520
        %1530 = vst.msk [vmem:[%s218 + $0x8] sm:$0xff] %vm865, %v1526
        %s1531 = sand.u32 %s137, 1
        %s1532 = scalar_lea.sflag [#allocation3], %s1531
        %s1533 = sand.u32 %s137, 1
        %s1534 = smul.addr %s1533, 16
        %s1535 = scalar_lea.vmem [#allocation2], %s1534
        // Predicated region
        $region41: #{tpu_custom_call.1} parent=39 // pred_check
          %p1536 = pneg %p147
        $region42: #{tpu_custom_call.1} parent=39 // pred_check_branch
          %1538 = sbr.rel (%p1536) target = $region44
        $region43: #{tpu_custom_call.1} parent=39 // pred_region
          %s1539 = smul.u32 2, %s19
          %s1541 = ssub.s32 256, 256
          %1542 = vsyncadd %s1532, %s1541
          %s1543 = smul.addr %s1539, 128
          %s1544 = scalar_lea.hbm %s5, %s1543
          %s1545 = sshll.u32 %s1535, 4
          %s1546 = int_to_ptr.vmem [resolvable:$true] %s1545
          %1551 = dma.vmem_to_hbm [thread:$0]  %s1546, 256, %s1544, %s1532, 128, 128, 8
        $region44: #{tpu_custom_call.1} parent=39 // pred_fallthru
          _
      $region40: #{tpu_custom_call.1} parent=5 // pred_fallthru
        _
      %p1552 = scmp.le.s32.totalorder 2, %s14
      // Predicated region
      $region45: #{tpu_custom_call.1} parent=5 // pred_check
        %p1553 = pneg %p1552
      $region46: #{tpu_custom_call.1} parent=5 // pred_check_branch
        %1555 = sbr.rel (%p1553) target = $region48
      $region47: #{tpu_custom_call.1} parent=5 // pred_region
        %s1556 = ssub.s32 %s14, 2
        // Predicated region
        $region49: #{tpu_custom_call.1} parent=47 // pred_check
          %p1557 = pneg %p153
        $region50: #{tpu_custom_call.1} parent=47 // pred_check_branch
          %1559 = sbr.rel (%p1557) target = $region52
        $region51: #{tpu_custom_call.1} parent=47 // pred_region
          %s1560 = sand.u32 %s138, 1
          %s1561 = scalar_lea.sflag [#allocation3], %s1560
          %s1562 = sand.u32 %s138, 1
          %s1563 = smul.addr %s1562, 16
          %s1564 = scalar_lea.vmem [#allocation2], %s1563
          %1565 = dma.done %s1561, 256
        $region52: #{tpu_custom_call.1} parent=47 // pred_fallthru
          _
      $region48: #{tpu_custom_call.1} parent=5 // pred_fallthru
        _
    $region6: #{tpu_custom_call.1} parent=1 // loop_footer
      %s18 = sadd.s32 1, %s14
    $region7: #{tpu_custom_call.1} parent=1 // loop_footer_branch
      %13 = sbr.rel target = $region3
    $region8: #{tpu_custom_call.1} parent=1 // loop_exit
      _
    %1566 = vsyncpa [#allocation3], 1
    %s1567 = scalar_lea.sflag [#allocation3], 1
    %1568 = vsyncpa %s1567, 1

</llo_original>
